<compile_context>
chip_gen: v5e
topology: v5e:2x2
jax: 0.10.0
libtpu: 0.0.40
codegen_flags: <defaults>
</compile_context>

<pallas_src>
import numpy as np
import jax
import jax.numpy as jnp
from jax import lax
from jax.experimental import pallas as pl
from jax.experimental.pallas import tpu as pltpu

# ----------------------------- config --------------------------------------
K = 1
PNODE_DIM = 1                      # d
PNODE_NUM = 4 ** (2 * K)           # 16
FNODE_NUM = 4 ** K                 # 4
NODE_HIDDEN = 3
GCN_DIM = 64
GCN_LAYERS = 2                     # kernel below is specialized for 2
CNN_DIM = 32
CNN_LAYERS = 3
CNN_KS = 6
FC_DIM = 100
LABEL_NUM = 3
OTHER_DIM = 5
BATCH = 2

CNN_L_OUT = PNODE_NUM - (CNN_KS - 1) * CNN_LAYERS   # 1
FLAT_DIM = CNN_L_OUT * CNN_DIM                      # 32
RATIO = GCN_DIM // PNODE_NUM                        # 4
PAD_ROWS = 8                                        # >= CNN_KS - 1, 8-aligned
N_P = BATCH * PNODE_NUM                             # 32
N_F = BATCH * FNODE_NUM                             # 8

assert GCN_LAYERS == 2, "kernel is specialized for gcn_layer_num == 2"
assert GCN_DIM == RATIO * PNODE_NUM
assert CNN_L_OUT == 1, "flatten/frame extraction assumes final conv length 1"


# --------------------------- slab packing -----------------------------------


class _SlabBuilder:
    """Stacks small f32 arrays into one (rows, width) slab, 8-row aligned."""

    def __init__(self, width):
        self.width = width
        self.chunks = []
        self.offsets = {}
        self.rows = 0

    def add(self, name, arr):
        a = np.asarray(arr, dtype=np.float32)
        if a.ndim == 1:
            a = a[None, :]
        r, c = a.shape
        assert c <= self.width, (name, a.shape, self.width)
        padded_r = -(-r // 8) * 8
        chunk = np.zeros((padded_r, self.width), np.float32)
        chunk[:r, :c] = a
        self.offsets[name] = (self.rows, r, c)
        self.chunks.append(chunk)
        self.rows += padded_r

    def build(self):
        slab = np.concatenate(self.chunks, axis=0)
        return jnp.asarray(slab), self.offsets


def _rd(ref, offsets, name):
    """Static slice of one packed section out of a slab ref."""
    s, r, c = offsets[name]
    return ref[s:s + r, :c]


# --------------------------- fused kernel -----------------------------------


def make_kernel(off_e, off_g, off_c):
    def kernel(xd_ref, xs_ref, other_ref, afw_ref, abw_ref,
               se_ref, sg_ref, sc_ref, o_ref):
        f32 = jnp.float32

        def dot(a, b):
            return jnp.dot(a, b, preferred_element_type=f32)

        # ---------------- graph side (SAGE x2, shared LayerNorm) ------------
        xd = xd_ref[...]                                     # (B, 16)
        xs = xs_ref[...]                                     # (B, 4)
        a_fw = afw_ref[...]                                  # (32, 8)
        a_bw = abw_ref[...]                                  # (8, 32)

        # node-MLP + layer-0 fold: the (.,3) intermediates never materialize.
        xexp_p = (dot(dot(_rd(sg_ref, off_g, "rrep_p"), xd),
                      _rd(se_ref, off_e, "ctile_p"))
                  * _rd(se_ref, off_e, "mask_p"))            # (32, 256)
        xp_rb = dot(xexp_p, _rd(sg_ref, off_g, "w_pr")) \
            + _rd(sg_ref, off_g, "bias_p")                   # (32, 64)

        xexp_f = (dot(dot(_rd(sg_ref, off_g, "rrep_f"), xs),
                      _rd(sg_ref, off_g, "ctile_f"))
                  * _rd(sg_ref, off_g, "mask_f"))            # (8, 16)
        xf_cat = dot(xexp_f, _rd(sc_ref, off_c, "w_flr")) \
            + _rd(sc_ref, off_c, "bias_f")                   # (8, 128)
        xf_l = xf_cat[:, :GCN_DIM]                           # x_f0 @ Wl1_0 (+b)
        xf_rb = xf_cat[:, GCN_DIM:]                          # x_f0 @ Wr2_0 (+b)

        # ---- GCN layer 0 (dropout is inference-mode identity) ----
        x_p = jnp.maximum(dot(a_fw, xf_l) + xp_rb, 0.0)                  # (32,64)
        x_f = jnp.maximum(dot(dot(a_bw, x_p), _rd(sg_ref, off_g, "wl2_0"))
                          + xf_rb, 0.0)                                  # (8,64)

        # shared LayerNorm (row-wise, so concatenating node sets is exact)
        z = jnp.concatenate([x_p, x_f], axis=0)                          # (40,64)
        mu = jnp.mean(z, axis=-1, keepdims=True)
        var = jnp.mean((z - mu) ** 2, axis=-1, keepdims=True)
        z = (z - mu) * lax.rsqrt(var + 1e-5)
        z = z * _rd(sg_ref, off_g, "ln_g") + _rd(sg_ref, off_g, "ln_b")
        x_p = z[:N_P]
        x_f = z[N_P:]

        # ---- GCN layer 1 (last; the reference's x_f update is dead -> skip)
        x_p = jnp.maximum(
            dot(a_fw, dot(x_f, _rd(sg_ref, off_g, "wl1_1")))
            + dot(x_p, _rd(sg_ref, off_g, "wr1_1"))
            + _rd(sg_ref, off_g, "bl1_1"), 0.0)                          # (32,64)

        # -------- torch.reshape(x_p, (-1, 64, 16)) + channel-last relayout --
        # xt[b*16+l, 16r+q] = x_p[b*16+q, 16r+l]; conv-0 input channels are
        # permuted at pack time to match this column order.
        x_pt = x_p.T                                                     # (64,32)
        parts = []
        for b in range(BATCH):
            blocks = [x_pt[PNODE_NUM * r:PNODE_NUM * (r + 1),
                           PNODE_NUM * b:PNODE_NUM * (b + 1)]
                      for r in range(RATIO)]
            parts.append(jnp.concatenate(blocks, axis=1))                # (16,64)
        parts.append(jnp.zeros((PAD_ROWS, GCN_DIM), f32))                # frame pad
        x = jnp.concatenate(parts, axis=0)                               # (40,64)

        # -------- CNN: accumulate-over-taps, both batch frames at once ------
        for layer in range(CNN_LAYERS):
            s, rows, cout = off_c[f"conv{layer}"]
            c_in = rows // CNN_KS
            acc = None
            for k in range(CNN_KS):
                wk = sc_ref[s + k * c_in:s + (k + 1) * c_in, :cout]      # (cin,32)
                part = dot(x[k:k + N_P, :], wk)
                acc = part if acc is None else acc + part
            x = jnp.maximum(acc + _rd(sc_ref, off_c, f"cb{layer}"), 0.0)  # (32,32)
            if layer != CNN_LAYERS - 1:
                x = jnp.concatenate(
                    [x, jnp.zeros((PAD_ROWS, CNN_DIM), f32)], axis=0)     # (40,32)

        # valid conv output = row 0 of each 16-row batch frame (l_out == 1)
        x_cnn = jnp.concatenate(
            [x[PNODE_NUM * b:PNODE_NUM * b + 1, :] for b in range(BATCH)],
            axis=0)                                                      # (2,32)

        # -------------------------- FC head + softmax -----------------------
        h = jnp.maximum(dot(x_cnn, _rd(sc_ref, off_c, "d1_w"))
                        + _rd(sc_ref, off_c, "d1_b"), 0.0)               # (2,100)
        h = jnp.maximum(dot(h, _rd(sc_ref, off_c, "d2_wa"))
                        + dot(other_ref[...], _rd(sc_ref, off_c, "d2_wb"))
                        + _rd(sc_ref, off_c, "d2_b"), 0.0)               # (2,105)
        logits = dot(h, _rd(sc_ref, off_c, "d3_w")) \
            + _rd(sc_ref, off_c, "d3_b")                                 # (2,3)

        m = jnp.max(logits, axis=-1, keepdims=True)
        e = jnp.exp(logits - m)
        ssum = jnp.sum(e, axis=-1, keepdims=True)
        inv = pl.reciprocal(ssum, approx=True)
        inv = inv * (2.0 - ssum * inv)          # one Newton step -> exact
        o_ref[...] = (e * inv).astype(o_ref.dtype)

    return kernel


def build_forward(off_e, off_g, off_c):
    kernel = make_kernel(off_e, off_g, off_c)
    vmem = pl.BlockSpec(memory_space=pltpu.MemorySpace.VMEM)
    call = pl.pallas_call(
        kernel,
        out_shape=jax.ShapeDtypeStruct((BATCH, LABEL_NUM), jnp.float32),
        in_specs=[vmem] * 8,
        out_specs=vmem,
    )

    def forward(slab_e, slab_g, slab_c, x_src, x_dst, other_feature, a_fw, a_bw):
        xd = x_dst.reshape(BATCH, PNODE_NUM * PNODE_DIM)     # (B, 16)
        xs = x_src.reshape(BATCH, FNODE_NUM)                 # (B, 4)
        return call(xd, xs, other_feature, a_fw, a_bw, slab_e, slab_g, slab_c)

    return forward


# ------------------------------ parameters ----------------------------------


def init_params(key):
    """'Torch-like' parameters (x @ W convention, W stored as (in, out))."""
    def nrm(k, shape, scale=0.1):
        return (scale * jax.random.normal(k, shape)).astype(jnp.float32)

    keys = iter(jax.random.split(key, 64))
    p = {}
    p["pnode_w"] = nrm(next(keys), (PNODE_NUM * PNODE_DIM, PNODE_NUM * NODE_HIDDEN))
    p["pnode_b"] = nrm(next(keys), (1, PNODE_NUM * NODE_HIDDEN))
    p["fnode_w"] = nrm(next(keys), (FNODE_NUM, FNODE_NUM * NODE_HIDDEN))
    p["fnode_b"] = nrm(next(keys), (1, FNODE_NUM * NODE_HIDDEN))

    g1, g2 = [], []
    for layer in range(GCN_LAYERS):
        d_src1 = NODE_HIDDEN if layer == 0 else GCN_DIM   # x_f dim into gconvs_1
        d_dst1 = NODE_HIDDEN if layer == 0 else GCN_DIM   # x_p dim into gconvs_1
        g1.append({"wl": nrm(next(keys), (d_src1, GCN_DIM)),
                   "bl": nrm(next(keys), (1, GCN_DIM)),
                   "wr": nrm(next(keys), (d_dst1, GCN_DIM))})
        d_src2 = GCN_DIM                                  # updated x_p into gconvs_2
        d_dst2 = NODE_HIDDEN if layer == 0 else GCN_DIM
        g2.append({"wl": nrm(next(keys), (d_src2, GCN_DIM)),
                   "bl": nrm(next(keys), (1, GCN_DIM)),
                   "wr": nrm(next(keys), (d_dst2, GCN_DIM))})
    p["g1"], p["g2"] = g1, g2

    p["ln_g"] = (1.0 + nrm(next(keys), (1, GCN_DIM))).astype(jnp.float32)
    p["ln_b"] = nrm(next(keys), (1, GCN_DIM))

    convs = []
    for layer in range(CNN_LAYERS):
        c_in = GCN_DIM if layer == 0 else CNN_DIM
        convs.append({"w": nrm(next(keys), (CNN_DIM, c_in, CNN_KS)),   # (Cout,Cin,ks)
                      "b": nrm(next(keys), (CNN_DIM,))})
    p["conv"] = convs

    p["d1_w"] = nrm(next(keys), (FLAT_DIM, FC_DIM))
    p["d1_b"] = nrm(next(keys), (1, FC_DIM))
    p["d2_w"] = nrm(next(keys), (FC_DIM + OTHER_DIM, FC_DIM + OTHER_DIM))
    p["d2_b"] = nrm(next(keys), (1, FC_DIM + OTHER_DIM))
    p["d3_w"] = nrm(next(keys), (FC_DIM + OTHER_DIM, LABEL_NUM))
    p["d3_b"] = nrm(next(keys), (1, LABEL_NUM))
    return p


def _node_mlp_constants(w, b, n_nodes, j_dim, hidden, batch):
    """Constants so that reshape(Linear(x_flat), (B*n_nodes, hidden)) becomes
    ((rrep @ x @ ctile) * mask) @ wbig + bnode, with no in-kernel reshape."""
    w = np.asarray(w, np.float32)
    b = np.asarray(b, np.float32)
    r = np.arange(batch * n_nodes)
    m = np.arange(n_nodes * j_dim)
    h = np.arange(hidden)
    rrep = (r[:, None] // n_nodes == np.arange(batch)[None, :]).astype(np.float32)
    ctile = (np.arange(j_dim)[:, None] == (m[None, :] % j_dim)).astype(np.float32)
    mask = ((m[None, :] // j_dim) == (r[:, None] % n_nodes)).astype(np.float32)
    wbig = w[(m % j_dim)[:, None],
             (hidden * (m // j_dim))[:, None] + h[None, :]]
    bnode = b[0, (hidden * (r % n_nodes))[:, None] + h[None, :]]
    return rrep, ctile, mask, wbig, bnode


def pack_kernel_params(p):
    """Fold + pack torch-like params into three lane-dense slabs."""
    rrep_p, ctile_p, mask_p, wbig_p, bnode_p = _node_mlp_constants(
        p["pnode_w"], p["pnode_b"], PNODE_NUM, PNODE_NUM * PNODE_DIM,
        NODE_HIDDEN, BATCH)
    rrep_f, ctile_f, mask_f, wbig_f, bnode_f = _node_mlp_constants(
        p["fnode_w"], p["fnode_b"], FNODE_NUM, FNODE_NUM, NODE_HIDDEN, BATCH)

    g1_0, g2_0 = p["g1"][0], p["g2"][0]
    wr1_0 = np.asarray(g1_0["wr"], np.float32)
    wl1_0 = np.asarray(g1_0["wl"], np.float32)
    wr2_0 = np.asarray(g2_0["wr"], np.float32)
    bl1_0 = np.asarray(g1_0["bl"], np.float32)
    bl2_0 = np.asarray(g2_0["bl"], np.float32)

    # fold node-MLPs into layer-0 SAGE weights (exact f32 host math)
    w_pr = wbig_p @ wr1_0                                   # (256, 64)
    bias_p = bnode_p @ wr1_0 + bl1_0                        # (32, 64)
    w_fl = wbig_f @ wl1_0                                   # (16, 64)
    w_fr = wbig_f @ wr2_0                                   # (16, 64)
    bias_fl = bnode_f @ wl1_0                               # (8, 64)
    bias_fr = bnode_f @ wr2_0 + bl2_0                       # (8, 64)
    w_flr = np.concatenate([w_fl, w_fr], axis=1)            # (16, 128)
    bias_f = np.concatenate([bias_fl, bias_fr], axis=1)     # (8, 128)

    # slab E (width 256): pnode expansion constants
    e = _SlabBuilder(PNODE_NUM * PNODE_NUM * PNODE_DIM)
    e.add("ctile_p", ctile_p)
    e.add("mask_p", mask_p)
    slab_e, off_e = e.build()

    # slab G (width 64): graph-side weights + small selector constants
    g = _SlabBuilder(GCN_DIM)
    g.add("rrep_p", rrep_p)
    g.add("rrep_f", rrep_f)
    g.add("ctile_f", ctile_f)
    g.add("mask_f", mask_f)
    g.add("w_pr", w_pr)
    g.add("bias_p", bias_p)
    g.add("wl2_0", g2_0["wl"])
    g.add("ln_g", p["ln_g"])
    g.add("ln_b", p["ln_b"])
    g.add("wl1_1", p["g1"][1]["wl"])
    g.add("wr1_1", p["g1"][1]["wr"])
    g.add("bl1_1", p["g1"][1]["bl"])
    slab_g, off_g = g.build()

    # slab C (width 128): fnode fold, conv tap weights, FC weights
    c = _SlabBuilder(128)
    c.add("w_flr", w_flr)
    c.add("bias_f", bias_f)

    # conv-0: tap-stacked weights with input channels permuted to the
    # in-kernel relayout column order (torch channel 4q+r -> column 16r+q).
    ch = np.arange(GCN_DIM)
    perm = PNODE_NUM * (ch % RATIO) + ch // RATIO
    w0 = np.asarray(p["conv"][0]["w"], np.float32)          # (32, 64, 6)
    taps0 = np.zeros((CNN_KS * GCN_DIM, CNN_DIM), np.float32)
    for k in range(CNN_KS):
        wk = np.zeros((GCN_DIM, CNN_DIM), np.float32)
        wk[perm, :] = w0[:, :, k].T
        taps0[k * GCN_DIM:(k + 1) * GCN_DIM] = wk
    c.add("conv0", taps0)
    for layer in (1, 2):
        w = np.asarray(p["conv"][layer]["w"], np.float32)   # (32, 32, 6)
        taps = np.concatenate([w[:, :, k].T for k in range(CNN_KS)], axis=0)
        c.add(f"conv{layer}", taps)
    for layer in range(CNN_LAYERS):
        c.add(f"cb{layer}",
              np.asarray(p["conv"][layer]["b"], np.float32).reshape(1, CNN_DIM))

    c.add("d1_w", p["d1_w"])
    c.add("d1_b", p["d1_b"])
    d2_w = np.asarray(p["d2_w"], np.float32)
    c.add("d2_wa", d2_w[:FC_DIM, :])         # rows for the CNN features
    c.add("d2_wb", d2_w[FC_DIM:, :])         # rows for other_feature
    c.add("d2_b", p["d2_b"])
    c.add("d3_w", p["d3_w"])
    c.add("d3_b", p["d3_b"])
    slab_c, off_c = c.build()

    return (slab_e, slab_g, slab_c), (off_e, off_g, off_c)


# ------------------------------ glue ----------------------------------------


def build_mean_adj(src, dst, n_src, n_dst):
    """Dense row-normalized adjacency: A[d, s] = count(s->d) / in_degree(d)."""
    a = jnp.zeros((n_dst, n_src), jnp.float32).at[dst, src].add(1.0)
    deg = a.sum(axis=1, keepdims=True)
    return a / jnp.maximum(deg, 1.0)


# ----------------------- pure-JAX reference (for checking) ------------------


def _mm(a, b):
    return jnp.matmul(a, b, precision=jax.lax.Precision.HIGHEST)


def _ref_conv1d(x, w, b):
    c_out, c_in, ks = w.shape
    l_out = x.shape[-1] - ks + 1
    cols = jnp.stack([x[:, :, k:k + l_out] for k in range(ks)], axis=-1)
    return jnp.einsum("bitk,oik->bot", cols, w,
                      precision=jax.lax.Precision.HIGHEST) + b[None, :, None]


def reference_forward(p, x_src, x_dst, other_feature, a_fw, a_bw):
    x_p = _mm(x_dst.reshape(-1, PNODE_NUM * PNODE_DIM), p["pnode_w"]) + p["pnode_b"]
    x_p = x_p.reshape(-1, NODE_HIDDEN)
    x_f = _mm(x_src.reshape(-1, FNODE_NUM), p["fnode_w"]) + p["fnode_b"]
    x_f = x_f.reshape(-1, NODE_HIDDEN)

    def sage(a, xs, xd, g):
        return _mm(_mm(a, xs), g["wl"]) + g["bl"] + _mm(xd, g["wr"])

    def ln(x):
        mu = x.mean(-1, keepdims=True)
        var = ((x - mu) ** 2).mean(-1, keepdims=True)
        return (x - mu) / jnp.sqrt(var + 1e-5) * p["ln_g"] + p["ln_b"]

    for i in range(GCN_LAYERS):
        x_p = jax.nn.relu(sage(a_fw, x_f, x_p, p["g1"][i]))
        x_f = jax.nn.relu(sage(a_bw, x_p, x_f, p["g2"][i]))
        if i != GCN_LAYERS - 1:
            x_p = ln(x_p)
            x_f = ln(x_f)

    x = x_p.reshape(-1, GCN_DIM, PNODE_NUM)
    for i in range(CNN_LAYERS):
        x = jax.nn.relu(_ref_conv1d(x, p["conv"][i]["w"], p["conv"][i]["b"]))
    x = x.reshape(x.shape[0], -1)
    x = jax.nn.relu(_mm(x, p["d1_w"]) + p["d1_b"])
    x = jnp.concatenate([x, other_feature], axis=1)
    x = jax.nn.relu(_mm(x, p["d2_w"]) + p["d2_b"])
    x = _mm(x, p["d3_w"]) + p["d3_b"]
    return jax.nn.softmax(x, axis=1)


# ------------------------------ main ----------------------------------------

if __name__ == "__main__":
    key = jax.random.PRNGKey(0)
    k_par, k_xs, k_xd, k_of, k_e = jax.random.split(key, 5)

    params = init_params(k_par)
    (slab_e, slab_g, slab_c), (off_e, off_g, off_c) = pack_kernel_params(params)
    forward = build_forward(off_e, off_g, off_c)

    x_src = jax.random.normal(k_xs, (BATCH, FNODE_NUM), jnp.float32)
    x_dst = jax.random.normal(k_xd, (BATCH, PNODE_NUM, PNODE_DIM), jnp.float32)
    other_feature = jax.random.normal(k_of, (BATCH, OTHER_DIM), jnp.float32)

    # deterministic bipartite edge_index: each pnode gets 2 fnode neighbours
    edges_per_p = 2
    p_idx = jnp.repeat(jnp.arange(BATCH * PNODE_NUM), edges_per_p)
    batch_of_p = p_idx // PNODE_NUM
    f_local = jax.random.randint(k_e, (p_idx.shape[0],), 0, FNODE_NUM)
    f_idx = batch_of_p * FNODE_NUM + f_local
    edge_index = jnp.stack([f_idx, p_idx]).astype(jnp.int32)       # (2, 64)

    # Adjacency precomputed ONCE, outside the jitted forward (edge structure is
    # static per call) -- keeps the scatter-add off the per-step hot path.
    ei_fw = edge_index[:, ::2]                                     # f -> p
    ei_bw = edge_index[::-1, :][:, 1::2]                           # p -> f
    a_fw = build_mean_adj(ei_fw[0], ei_fw[1], N_F, N_P)            # (32, 8)
    a_bw = build_mean_adj(ei_bw[0], ei_bw[1], N_P, N_F)            # (8, 32)

    out = jax.jit(forward)(slab_e, slab_g, slab_c,
                           x_src, x_dst, other_feature, a_fw, a_bw)
    out = jax.block_until_ready(out)

    ref = reference_forward(params, x_src, x_dst, other_feature, a_fw, a_bw)

    assert out.shape == (BATCH, LABEL_NUM)
    assert bool(jnp.all(jnp.isfinite(out)))
    assert bool(jnp.allclose(out.sum(axis=1), 1.0, atol=1e-4))
    assert bool(jnp.allclose(out, ref, atol=2e-3, rtol=2e-3))
    print("KERNEL_OK")
</pallas_src>

<mosaic_0001>
module attributes {stable_mosaic.version = 11 : i64} {
  func.func @kernel(%arg0: memref<2x16xf32, #tpu.memory_space<vmem>>, %arg1: memref<2x4xf32, #tpu.memory_space<vmem>>, %arg2: memref<2x5xf32, #tpu.memory_space<vmem>>, %arg3: memref<32x8xf32, #tpu.memory_space<vmem>>, %arg4: memref<8x32xf32, #tpu.memory_space<vmem>>, %arg5: memref<48x256xf32, #tpu.memory_space<vmem>>, %arg6: memref<560x64xf32, #tpu.memory_space<vmem>>, %arg7: memref<1096x128xf32, #tpu.memory_space<vmem>>, %arg8: memref<2x3xf32, #tpu.memory_space<vmem>>) attributes {dimension_semantics = [], scalar_prefetch = 0 : i64, scratch_operands = 0 : i64, tpu.core_type = #tpu.core_type<tc>} {
    %c0 = arith.constant 0 : index
    %c0_0 = arith.constant 0 : index
    %0 = vector.load %arg0[%c0, %c0_0] : memref<2x16xf32, #tpu.memory_space<vmem>>, vector<2x16xf32>
    %c0_1 = arith.constant 0 : index
    %c0_2 = arith.constant 0 : index
    %1 = vector.load %arg1[%c0_1, %c0_2] : memref<2x4xf32, #tpu.memory_space<vmem>>, vector<2x4xf32>
    %c0_3 = arith.constant 0 : index
    %c0_4 = arith.constant 0 : index
    %2 = vector.load %arg3[%c0_3, %c0_4] : memref<32x8xf32, #tpu.memory_space<vmem>>, vector<32x8xf32>
    %c0_5 = arith.constant 0 : index
    %c0_6 = arith.constant 0 : index
    %3 = vector.load %arg4[%c0_5, %c0_6] : memref<8x32xf32, #tpu.memory_space<vmem>>, vector<8x32xf32>
    %c0_7 = arith.constant 0 : index
    %c0_8 = arith.constant 0 : index
    %4 = vector.load %arg6[%c0_7, %c0_8] : memref<560x64xf32, #tpu.memory_space<vmem>>, vector<32x2xf32>
    %cst = arith.constant dense<0.000000e+00> : vector<32x16xf32>
    %5 = tpu.matmul %4, %0, %cst {dimension_numbers = #tpu.dot_dimension_numbers<[1], [0], [0], [1], [0, 0, 1, 1], [], []>} : vector<32x2xf32>, vector<2x16xf32>, vector<32x16xf32> -> vector<32x16xf32>
    %c0_9 = arith.constant 0 : index
    %c0_10 = arith.constant 0 : index
    %6 = vector.load %arg5[%c0_9, %c0_10] : memref<48x256xf32, #tpu.memory_space<vmem>>, vector<16x256xf32>
    %cst_11 = arith.constant dense<0.000000e+00> : vector<32x256xf32>
    %7 = tpu.matmul %5, %6, %cst_11 {dimension_numbers = #tpu.dot_dimension_numbers<[1], [0], [0], [1], [0, 0, 1, 1], [], []>} : vector<32x16xf32>, vector<16x256xf32>, vector<32x256xf32> -> vector<32x256xf32>
    %c16 = arith.constant 16 : index
    %c0_12 = arith.constant 0 : index
    %8 = vector.load %arg5[%c16, %c0_12] : memref<48x256xf32, #tpu.memory_space<vmem>>, vector<32x256xf32>
    %9 = arith.mulf %7, %8 : vector<32x256xf32>
    %c56 = arith.constant 56 : index
    %c0_13 = arith.constant 0 : index
    %10 = vector.load %arg6[%c56, %c0_13] : memref<560x64xf32, #tpu.memory_space<vmem>>, vector<256x64xf32>
    %cst_14 = arith.constant dense<0.000000e+00> : vector<32x64xf32>
    %11 = tpu.matmul %9, %10, %cst_14 {dimension_numbers = #tpu.dot_dimension_numbers<[1], [0], [0], [1], [0, 0, 1, 1], [], []>} : vector<32x256xf32>, vector<256x64xf32>, vector<32x64xf32> -> vector<32x64xf32>
    %c312 = arith.constant 312 : index
    %c0_15 = arith.constant 0 : index
    %12 = vector.load %arg6[%c312, %c0_15] : memref<560x64xf32, #tpu.memory_space<vmem>>, vector<32x64xf32>
    %13 = arith.addf %11, %12 : vector<32x64xf32>
    %c32 = arith.constant 32 : index
    %c0_16 = arith.constant 0 : index
    %14 = vector.load %arg6[%c32, %c0_16] : memref<560x64xf32, #tpu.memory_space<vmem>>, vector<8x2xf32>
    %cst_17 = arith.constant dense<0.000000e+00> : vector<8x4xf32>
    %15 = tpu.matmul %14, %1, %cst_17 {dimension_numbers = #tpu.dot_dimension_numbers<[1], [0], [0], [1], [0, 0, 1, 1], [], []>} : vector<8x2xf32>, vector<2x4xf32>, vector<8x4xf32> -> vector<8x4xf32>
    %c40 = arith.constant 40 : index
    %c0_18 = arith.constant 0 : index
    %16 = vector.load %arg6[%c40, %c0_18] : memref<560x64xf32, #tpu.memory_space<vmem>>, vector<4x16xf32>
    %cst_19 = arith.constant dense<0.000000e+00> : vector<8x16xf32>
    %17 = tpu.matmul %15, %16, %cst_19 {dimension_numbers = #tpu.dot_dimension_numbers<[1], [0], [0], [1], [0, 0, 1, 1], [], []>} : vector<8x4xf32>, vector<4x16xf32>, vector<8x16xf32> -> vector<8x16xf32>
    %c48 = arith.constant 48 : index
    %c0_20 = arith.constant 0 : index
    %18 = vector.load %arg6[%c48, %c0_20] : memref<560x64xf32, #tpu.memory_space<vmem>>, vector<8x16xf32>
    %19 = arith.mulf %17, %18 : vector<8x16xf32>
    %c0_21 = arith.constant 0 : index
    %c0_22 = arith.constant 0 : index
    %20 = vector.load %arg7[%c0_21, %c0_22] : memref<1096x128xf32, #tpu.memory_space<vmem>>, vector<16x128xf32>
    %cst_23 = arith.constant dense<0.000000e+00> : vector<8x128xf32>
    %21 = tpu.matmul %19, %20, %cst_23 {dimension_numbers = #tpu.dot_dimension_numbers<[1], [0], [0], [1], [0, 0, 1, 1], [], []>} : vector<8x16xf32>, vector<16x128xf32>, vector<8x128xf32> -> vector<8x128xf32>
    %c16_24 = arith.constant 16 : index
    %c0_25 = arith.constant 0 : index
    %22 = vector.load %arg7[%c16_24, %c0_25] : memref<1096x128xf32, #tpu.memory_space<vmem>>, vector<8x128xf32>
    %23 = arith.addf %21, %22 : vector<8x128xf32>
    %24 = vector.extract_strided_slice %23 {offsets = [0, 0], sizes = [8, 64], strides = [1, 1]} : vector<8x128xf32> to vector<8x64xf32>
    %25 = vector.extract_strided_slice %23 {offsets = [0, 64], sizes = [8, 64], strides = [1, 1]} : vector<8x128xf32> to vector<8x64xf32>
    %cst_26 = arith.constant dense<0.000000e+00> : vector<32x64xf32>
    %26 = tpu.matmul %2, %24, %cst_26 {dimension_numbers = #tpu.dot_dimension_numbers<[1], [0], [0], [1], [0, 0, 1, 1], [], []>} : vector<32x8xf32>, vector<8x64xf32>, vector<32x64xf32> -> vector<32x64xf32>
    %27 = arith.addf %26, %13 : vector<32x64xf32>
    %cst_27 = arith.constant 0.000000e+00 : f32
    %28 = vector.broadcast %cst_27 : f32 to vector<32x64xf32>
    %29 = arith.maximumf %27, %28 : vector<32x64xf32>
    %cst_28 = arith.constant dense<0.000000e+00> : vector<8x64xf32>
    %30 = tpu.matmul %3, %29, %cst_28 {dimension_numbers = #tpu.dot_dimension_numbers<[1], [0], [0], [1], [0, 0, 1, 1], [], []>} : vector<8x32xf32>, vector<32x64xf32>, vector<8x64xf32> -> vector<8x64xf32>
    %c344 = arith.constant 344 : index
    %c0_29 = arith.constant 0 : index
    %31 = vector.load %arg6[%c344, %c0_29] : memref<560x64xf32, #tpu.memory_space<vmem>>, vector<64x64xf32>
    %cst_30 = arith.constant dense<0.000000e+00> : vector<8x64xf32>
    %32 = tpu.matmul %30, %31, %cst_30 {dimension_numbers = #tpu.dot_dimension_numbers<[1], [0], [0], [1], [0, 0, 1, 1], [], []>} : vector<8x64xf32>, vector<64x64xf32>, vector<8x64xf32> -> vector<8x64xf32>
    %33 = arith.addf %32, %25 : vector<8x64xf32>
    %cst_31 = arith.constant 0.000000e+00 : f32
    %34 = vector.broadcast %cst_31 : f32 to vector<8x64xf32>
    %35 = arith.maximumf %33, %34 : vector<8x64xf32>
    %36 = tpu.concatenate %29, %35 in 0 : vector<32x64xf32>, vector<8x64xf32> -> vector<40x64xf32>
    %cst_32 = arith.constant dense<0.000000e+00> : vector<40xf32>
    %37 = vector.multi_reduction <add>, %36, %cst_32 [1] : vector<40x64xf32> to vector<40xf32>
    %38 = vector.shape_cast %37 : vector<40xf32> to vector<40x1xf32>
    %cst_33 = arith.constant 6.400000e+01 : f32
    %39 = vector.broadcast %cst_33 : f32 to vector<40x1xf32>
    %40 = arith.divf %38, %39 : vector<40x1xf32>
    %41 = vector.broadcast %40 : vector<40x1xf32> to vector<40x64xf32>
    %42 = arith.subf %36, %41 : vector<40x64xf32>
    %43 = arith.mulf %42, %42 : vector<40x64xf32>
    %cst_34 = arith.constant dense<0.000000e+00> : vector<40xf32>
    %44 = vector.multi_reduction <add>, %43, %cst_34 [1] : vector<40x64xf32> to vector<40xf32>
    %45 = vector.shape_cast %44 : vector<40xf32> to vector<40x1xf32>
    %cst_35 = arith.constant 6.400000e+01 : f32
    %46 = vector.broadcast %cst_35 : f32 to vector<40x1xf32>
    %47 = arith.divf %45, %46 : vector<40x1xf32>
    %48 = vector.broadcast %40 : vector<40x1xf32> to vector<40x64xf32>
    %49 = arith.subf %36, %48 : vector<40x64xf32>
    %cst_36 = arith.constant 9.99999974E-6 : f32
    %50 = vector.broadcast %cst_36 : f32 to vector<40x1xf32>
    %51 = arith.addf %47, %50 : vector<40x1xf32>
    %52 = math.rsqrt %51 : vector<40x1xf32>
    %53 = vector.broadcast %52 : vector<40x1xf32> to vector<40x64xf32>
    %54 = arith.mulf %49, %53 : vector<40x64xf32>
    %c408 = arith.constant 408 : index
    %c0_37 = arith.constant 0 : index
    %55 = vector.load %arg6[%c408, %c0_37] : memref<560x64xf32, #tpu.memory_space<vmem>>, vector<1x64xf32>
    %56 = vector.broadcast %55 : vector<1x64xf32> to vector<40x64xf32>
    %57 = arith.mulf %54, %56 : vector<40x64xf32>
    %c416 = arith.constant 416 : index
    %c0_38 = arith.constant 0 : index
    %58 = vector.load %arg6[%c416, %c0_38] : memref<560x64xf32, #tpu.memory_space<vmem>>, vector<1x64xf32>
    %59 = vector.broadcast %58 : vector<1x64xf32> to vector<40x64xf32>
    %60 = arith.addf %57, %59 : vector<40x64xf32>
    %61 = vector.extract_strided_slice %60 {offsets = [0, 0], sizes = [32, 64], strides = [1, 1]} : vector<40x64xf32> to vector<32x64xf32>
    %62 = vector.extract_strided_slice %60 {offsets = [32, 0], sizes = [8, 64], strides = [1, 1]} : vector<40x64xf32> to vector<8x64xf32>
    %c424 = arith.constant 424 : index
    %c0_39 = arith.constant 0 : index
    %63 = vector.load %arg6[%c424, %c0_39] : memref<560x64xf32, #tpu.memory_space<vmem>>, vector<64x64xf32>
    %cst_40 = arith.constant dense<0.000000e+00> : vector<8x64xf32>
    %64 = tpu.matmul %62, %63, %cst_40 {dimension_numbers = #tpu.dot_dimension_numbers<[1], [0], [0], [1], [0, 0, 1, 1], [], []>} : vector<8x64xf32>, vector<64x64xf32>, vector<8x64xf32> -> vector<8x64xf32>
    %cst_41 = arith.constant dense<0.000000e+00> : vector<32x64xf32>
    %65 = tpu.matmul %2, %64, %cst_41 {dimension_numbers = #tpu.dot_dimension_numbers<[1], [0], [0], [1], [0, 0, 1, 1], [], []>} : vector<32x8xf32>, vector<8x64xf32>, vector<32x64xf32> -> vector<32x64xf32>
    %c488 = arith.constant 488 : index
    %c0_42 = arith.constant 0 : index
    %66 = vector.load %arg6[%c488, %c0_42] : memref<560x64xf32, #tpu.memory_space<vmem>>, vector<64x64xf32>
    %cst_43 = arith.constant dense<0.000000e+00> : vector<32x64xf32>
    %67 = tpu.matmul %61, %66, %cst_43 {dimension_numbers = #tpu.dot_dimension_numbers<[1], [0], [0], [1], [0, 0, 1, 1], [], []>} : vector<32x64xf32>, vector<64x64xf32>, vector<32x64xf32> -> vector<32x64xf32>
    %68 = arith.addf %65, %67 : vector<32x64xf32>
    %c552 = arith.constant 552 : index
    %c0_44 = arith.constant 0 : index
    %69 = vector.load %arg6[%c552, %c0_44] : memref<560x64xf32, #tpu.memory_space<vmem>>, vector<1x64xf32>
    %70 = vector.broadcast %69 : vector<1x64xf32> to vector<32x64xf32>
    %71 = arith.addf %68, %70 : vector<32x64xf32>
    %cst_45 = arith.constant 0.000000e+00 : f32
    %72 = vector.broadcast %cst_45 : f32 to vector<32x64xf32>
    %73 = arith.maximumf %71, %72 : vector<32x64xf32>
    %74 = tpu.transpose %73, [1, 0] : vector<32x64xf32> -> vector<64x32xf32>
    %75 = vector.extract_strided_slice %74 {offsets = [0, 0], sizes = [16, 16], strides = [1, 1]} : vector<64x32xf32> to vector<16x16xf32>
    %76 = vector.extract_strided_slice %74 {offsets = [16, 0], sizes = [16, 16], strides = [1, 1]} : vector<64x32xf32> to vector<16x16xf32>
    %77 = vector.extract_strided_slice %74 {offsets = [32, 0], sizes = [16, 16], strides = [1, 1]} : vector<64x32xf32> to vector<16x16xf32>
    %78 = vector.extract_strided_slice %74 {offsets = [48, 0], sizes = [16, 16], strides = [1, 1]} : vector<64x32xf32> to vector<16x16xf32>
    %79 = tpu.concatenate %75, %76, %77, %78 in 1 : vector<16x16xf32>, vector<16x16xf32>, vector<16x16xf32>, vector<16x16xf32> -> vector<16x64xf32>
    %80 = vector.extract_strided_slice %74 {offsets = [0, 16], sizes = [16, 16], strides = [1, 1]} : vector<64x32xf32> to vector<16x16xf32>
    %81 = vector.extract_strided_slice %74 {offsets = [16, 16], sizes = [16, 16], strides = [1, 1]} : vector<64x32xf32> to vector<16x16xf32>
    %82 = vector.extract_strided_slice %74 {offsets = [32, 16], sizes = [16, 16], strides = [1, 1]} : vector<64x32xf32> to vector<16x16xf32>
    %83 = vector.extract_strided_slice %74 {offsets = [48, 16], sizes = [16, 16], strides = [1, 1]} : vector<64x32xf32> to vector<16x16xf32>
    %84 = tpu.concatenate %80, %81, %82, %83 in 1 : vector<16x16xf32>, vector<16x16xf32>, vector<16x16xf32>, vector<16x16xf32> -> vector<16x64xf32>
    %cst_46 = arith.constant 0.000000e+00 : f32
    %85 = vector.broadcast %cst_46 : f32 to vector<8x64xf32>
    %86 = tpu.concatenate %79, %84, %85 in 0 : vector<16x64xf32>, vector<16x64xf32>, vector<8x64xf32> -> vector<40x64xf32>
    %c24 = arith.constant 24 : index
    %c0_47 = arith.constant 0 : index
    %87 = vector.load %arg7[%c24, %c0_47] : memref<1096x128xf32, #tpu.memory_space<vmem>>, vector<64x32xf32>
    %88 = vector.extract_strided_slice %86 {offsets = [0, 0], sizes = [32, 64], strides = [1, 1]} : vector<40x64xf32> to vector<32x64xf32>
    %cst_48 = arith.constant dense<0.000000e+00> : vector<32x32xf32>
    %89 = tpu.matmul %88, %87, %cst_48 {dimension_numbers = #tpu.dot_dimension_numbers<[1], [0], [0], [1], [0, 0, 1, 1], [], []>} : vector<32x64xf32>, vector<64x32xf32>, vector<32x32xf32> -> vector<32x32xf32>
    %c88 = arith.constant 88 : index
    %c0_49 = arith.constant 0 : index
    %90 = vector.load %arg7[%c88, %c0_49] : memref<1096x128xf32, #tpu.memory_space<vmem>>, vector<64x32xf32>
    %91 = vector.extract_strided_slice %86 {offsets = [1, 0], sizes = [32, 64], strides = [1, 1]} : vector<40x64xf32> to vector<32x64xf32>
    %cst_50 = arith.constant dense<0.000000e+00> : vector<32x32xf32>
    %92 = tpu.matmul %91, %90, %cst_50 {dimension_numbers = #tpu.dot_dimension_numbers<[1], [0], [0], [1], [0, 0, 1, 1], [], []>} : vector<32x64xf32>, vector<64x32xf32>, vector<32x32xf32> -> vector<32x32xf32>
    %93 = arith.addf %89, %92 : vector<32x32xf32>
    %c152 = arith.constant 152 : index
    %c0_51 = arith.constant 0 : index
    %94 = vector.load %arg7[%c152, %c0_51] : memref<1096x128xf32, #tpu.memory_space<vmem>>, vector<64x32xf32>
    %95 = vector.extract_strided_slice %86 {offsets = [2, 0], sizes = [32, 64], strides = [1, 1]} : vector<40x64xf32> to vector<32x64xf32>
    %cst_52 = arith.constant dense<0.000000e+00> : vector<32x32xf32>
    %96 = tpu.matmul %95, %94, %cst_52 {dimension_numbers = #tpu.dot_dimension_numbers<[1], [0], [0], [1], [0, 0, 1, 1], [], []>} : vector<32x64xf32>, vector<64x32xf32>, vector<32x32xf32> -> vector<32x32xf32>
    %97 = arith.addf %93, %96 : vector<32x32xf32>
    %c216 = arith.constant 216 : index
    %c0_53 = arith.constant 0 : index
    %98 = vector.load %arg7[%c216, %c0_53] : memref<1096x128xf32, #tpu.memory_space<vmem>>, vector<64x32xf32>
    %99 = vector.extract_strided_slice %86 {offsets = [3, 0], sizes = [32, 64], strides = [1, 1]} : vector<40x64xf32> to vector<32x64xf32>
    %cst_54 = arith.constant dense<0.000000e+00> : vector<32x32xf32>
    %100 = tpu.matmul %99, %98, %cst_54 {dimension_numbers = #tpu.dot_dimension_numbers<[1], [0], [0], [1], [0, 0, 1, 1], [], []>} : vector<32x64xf32>, vector<64x32xf32>, vector<32x32xf32> -> vector<32x32xf32>
    %101 = arith.addf %97, %100 : vector<32x32xf32>
    %c280 = arith.constant 280 : index
    %c0_55 = arith.constant 0 : index
    %102 = vector.load %arg7[%c280, %c0_55] : memref<1096x128xf32, #tpu.memory_space<vmem>>, vector<64x32xf32>
    %103 = vector.extract_strided_slice %86 {offsets = [4, 0], sizes = [32, 64], strides = [1, 1]} : vector<40x64xf32> to vector<32x64xf32>
    %cst_56 = arith.constant dense<0.000000e+00> : vector<32x32xf32>
    %104 = tpu.matmul %103, %102, %cst_56 {dimension_numbers = #tpu.dot_dimension_numbers<[1], [0], [0], [1], [0, 0, 1, 1], [], []>} : vector<32x64xf32>, vector<64x32xf32>, vector<32x32xf32> -> vector<32x32xf32>
    %105 = arith.addf %101, %104 : vector<32x32xf32>
    %c344_57 = arith.constant 344 : index
    %c0_58 = arith.constant 0 : index
    %106 = vector.load %arg7[%c344_57, %c0_58] : memref<1096x128xf32, #tpu.memory_space<vmem>>, vector<64x32xf32>
    %107 = vector.extract_strided_slice %86 {offsets = [5, 0], sizes = [32, 64], strides = [1, 1]} : vector<40x64xf32> to vector<32x64xf32>
    %cst_59 = arith.constant dense<0.000000e+00> : vector<32x32xf32>
    %108 = tpu.matmul %107, %106, %cst_59 {dimension_numbers = #tpu.dot_dimension_numbers<[1], [0], [0], [1], [0, 0, 1, 1], [], []>} : vector<32x64xf32>, vector<64x32xf32>, vector<32x32xf32> -> vector<32x32xf32>
    %109 = arith.addf %105, %108 : vector<32x32xf32>
    %c792 = arith.constant 792 : index
    %c0_60 = arith.constant 0 : index
    %110 = vector.load %arg7[%c792, %c0_60] : memref<1096x128xf32, #tpu.memory_space<vmem>>, vector<1x32xf32>
    %111 = vector.broadcast %110 : vector<1x32xf32> to vector<32x32xf32>
    %112 = arith.addf %109, %111 : vector<32x32xf32>
    %cst_61 = arith.constant 0.000000e+00 : f32
    %113 = vector.broadcast %cst_61 : f32 to vector<32x32xf32>
    %114 = arith.maximumf %112, %113 : vector<32x32xf32>
    %cst_62 = arith.constant 0.000000e+00 : f32
    %115 = vector.broadcast %cst_62 : f32 to vector<8x32xf32>
    %116 = tpu.concatenate %114, %115 in 0 : vector<32x32xf32>, vector<8x32xf32> -> vector<40x32xf32>
    %c408_63 = arith.constant 408 : index
    %c0_64 = arith.constant 0 : index
    %117 = vector.load %arg7[%c408_63, %c0_64] : memref<1096x128xf32, #tpu.memory_space<vmem>>, vector<32x32xf32>
    %118 = vector.extract_strided_slice %116 {offsets = [0, 0], sizes = [32, 32], strides = [1, 1]} : vector<40x32xf32> to vector<32x32xf32>
    %cst_65 = arith.constant dense<0.000000e+00> : vector<32x32xf32>
    %119 = tpu.matmul %118, %117, %cst_65 {dimension_numbers = #tpu.dot_dimension_numbers<[1], [0], [0], [1], [0, 0, 1, 1], [], []>} : vector<32x32xf32>, vector<32x32xf32>, vector<32x32xf32> -> vector<32x32xf32>
    %c440 = arith.constant 440 : index
    %c0_66 = arith.constant 0 : index
    %120 = vector.load %arg7[%c440, %c0_66] : memref<1096x128xf32, #tpu.memory_space<vmem>>, vector<32x32xf32>
    %121 = vector.extract_strided_slice %116 {offsets = [1, 0], sizes = [32, 32], strides = [1, 1]} : vector<40x32xf32> to vector<32x32xf32>
    %cst_67 = arith.constant dense<0.000000e+00> : vector<32x32xf32>
    %122 = tpu.matmul %121, %120, %cst_67 {dimension_numbers = #tpu.dot_dimension_numbers<[1], [0], [0], [1], [0, 0, 1, 1], [], []>} : vector<32x32xf32>, vector<32x32xf32>, vector<32x32xf32> -> vector<32x32xf32>
    %123 = arith.addf %119, %122 : vector<32x32xf32>
    %c472 = arith.constant 472 : index
    %c0_68 = arith.constant 0 : index
    %124 = vector.load %arg7[%c472, %c0_68] : memref<1096x128xf32, #tpu.memory_space<vmem>>, vector<32x32xf32>
    %125 = vector.extract_strided_slice %116 {offsets = [2, 0], sizes = [32, 32], strides = [1, 1]} : vector<40x32xf32> to vector<32x32xf32>
    %cst_69 = arith.constant dense<0.000000e+00> : vector<32x32xf32>
    %126 = tpu.matmul %125, %124, %cst_69 {dimension_numbers = #tpu.dot_dimension_numbers<[1], [0], [0], [1], [0, 0, 1, 1], [], []>} : vector<32x32xf32>, vector<32x32xf32>, vector<32x32xf32> -> vector<32x32xf32>
    %127 = arith.addf %123, %126 : vector<32x32xf32>
    %c504 = arith.constant 504 : index
    %c0_70 = arith.constant 0 : index
    %128 = vector.load %arg7[%c504, %c0_70] : memref<1096x128xf32, #tpu.memory_space<vmem>>, vector<32x32xf32>
    %129 = vector.extract_strided_slice %116 {offsets = [3, 0], sizes = [32, 32], strides = [1, 1]} : vector<40x32xf32> to vector<32x32xf32>
    %cst_71 = arith.constant dense<0.000000e+00> : vector<32x32xf32>
    %130 = tpu.matmul %129, %128, %cst_71 {dimension_numbers = #tpu.dot_dimension_numbers<[1], [0], [0], [1], [0, 0, 1, 1], [], []>} : vector<32x32xf32>, vector<32x32xf32>, vector<32x32xf32> -> vector<32x32xf32>
    %131 = arith.addf %127, %130 : vector<32x32xf32>
    %c536 = arith.constant 536 : index
    %c0_72 = arith.constant 0 : index
    %132 = vector.load %arg7[%c536, %c0_72] : memref<1096x128xf32, #tpu.memory_space<vmem>>, vector<32x32xf32>
    %133 = vector.extract_strided_slice %116 {offsets = [4, 0], sizes = [32, 32], strides = [1, 1]} : vector<40x32xf32> to vector<32x32xf32>
    %cst_73 = arith.constant dense<0.000000e+00> : vector<32x32xf32>
    %134 = tpu.matmul %133, %132, %cst_73 {dimension_numbers = #tpu.dot_dimension_numbers<[1], [0], [0], [1], [0, 0, 1, 1], [], []>} : vector<32x32xf32>, vector<32x32xf32>, vector<32x32xf32> -> vector<32x32xf32>
    %135 = arith.addf %131, %134 : vector<32x32xf32>
    %c568 = arith.constant 568 : index
    %c0_74 = arith.constant 0 : index
    %136 = vector.load %arg7[%c568, %c0_74] : memref<1096x128xf32, #tpu.memory_space<vmem>>, vector<32x32xf32>
    %137 = vector.extract_strided_slice %116 {offsets = [5, 0], sizes = [32, 32], strides = [1, 1]} : vector<40x32xf32> to vector<32x32xf32>
    %cst_75 = arith.constant dense<0.000000e+00> : vector<32x32xf32>
    %138 = tpu.matmul %137, %136, %cst_75 {dimension_numbers = #tpu.dot_dimension_numbers<[1], [0], [0], [1], [0, 0, 1, 1], [], []>} : vector<32x32xf32>, vector<32x32xf32>, vector<32x32xf32> -> vector<32x32xf32>
    %139 = arith.addf %135, %138 : vector<32x32xf32>
    %c800 = arith.constant 800 : index
    %c0_76 = arith.constant 0 : index
    %140 = vector.load %arg7[%c800, %c0_76] : memref<1096x128xf32, #tpu.memory_space<vmem>>, vector<1x32xf32>
    %141 = vector.broadcast %140 : vector<1x32xf32> to vector<32x32xf32>
    %142 = arith.addf %139, %141 : vector<32x32xf32>
    %cst_77 = arith.constant 0.000000e+00 : f32
    %143 = vector.broadcast %cst_77 : f32 to vector<32x32xf32>
    %144 = arith.maximumf %142, %143 : vector<32x32xf32>
    %cst_78 = arith.constant 0.000000e+00 : f32
    %145 = vector.broadcast %cst_78 : f32 to vector<8x32xf32>
    %146 = tpu.concatenate %144, %145 in 0 : vector<32x32xf32>, vector<8x32xf32> -> vector<40x32xf32>
    %c600 = arith.constant 600 : index
    %c0_79 = arith.constant 0 : index
    %147 = vector.load %arg7[%c600, %c0_79] : memref<1096x128xf32, #tpu.memory_space<vmem>>, vector<32x32xf32>
    %148 = vector.extract_strided_slice %146 {offsets = [0, 0], sizes = [32, 32], strides = [1, 1]} : vector<40x32xf32> to vector<32x32xf32>
    %cst_80 = arith.constant dense<0.000000e+00> : vector<32x32xf32>
    %149 = tpu.matmul %148, %147, %cst_80 {dimension_numbers = #tpu.dot_dimension_numbers<[1], [0], [0], [1], [0, 0, 1, 1], [], []>} : vector<32x32xf32>, vector<32x32xf32>, vector<32x32xf32> -> vector<32x32xf32>
    %c632 = arith.constant 632 : index
    %c0_81 = arith.constant 0 : index
    %150 = vector.load %arg7[%c632, %c0_81] : memref<1096x128xf32, #tpu.memory_space<vmem>>, vector<32x32xf32>
    %151 = vector.extract_strided_slice %146 {offsets = [1, 0], sizes = [32, 32], strides = [1, 1]} : vector<40x32xf32> to vector<32x32xf32>
    %cst_82 = arith.constant dense<0.000000e+00> : vector<32x32xf32>
    %152 = tpu.matmul %151, %150, %cst_82 {dimension_numbers = #tpu.dot_dimension_numbers<[1], [0], [0], [1], [0, 0, 1, 1], [], []>} : vector<32x32xf32>, vector<32x32xf32>, vector<32x32xf32> -> vector<32x32xf32>
    %153 = arith.addf %149, %152 : vector<32x32xf32>
    %c664 = arith.constant 664 : index
    %c0_83 = arith.constant 0 : index
    %154 = vector.load %arg7[%c664, %c0_83] : memref<1096x128xf32, #tpu.memory_space<vmem>>, vector<32x32xf32>
    %155 = vector.extract_strided_slice %146 {offsets = [2, 0], sizes = [32, 32], strides = [1, 1]} : vector<40x32xf32> to vector<32x32xf32>
    %cst_84 = arith.constant dense<0.000000e+00> : vector<32x32xf32>
    %156 = tpu.matmul %155, %154, %cst_84 {dimension_numbers = #tpu.dot_dimension_numbers<[1], [0], [0], [1], [0, 0, 1, 1], [], []>} : vector<32x32xf32>, vector<32x32xf32>, vector<32x32xf32> -> vector<32x32xf32>
    %157 = arith.addf %153, %156 : vector<32x32xf32>
    %c696 = arith.constant 696 : index
    %c0_85 = arith.constant 0 : index
    %158 = vector.load %arg7[%c696, %c0_85] : memref<1096x128xf32, #tpu.memory_space<vmem>>, vector<32x32xf32>
    %159 = vector.extract_strided_slice %146 {offsets = [3, 0], sizes = [32, 32], strides = [1, 1]} : vector<40x32xf32> to vector<32x32xf32>
    %cst_86 = arith.constant dense<0.000000e+00> : vector<32x32xf32>
    %160 = tpu.matmul %159, %158, %cst_86 {dimension_numbers = #tpu.dot_dimension_numbers<[1], [0], [0], [1], [0, 0, 1, 1], [], []>} : vector<32x32xf32>, vector<32x32xf32>, vector<32x32xf32> -> vector<32x32xf32>
    %161 = arith.addf %157, %160 : vector<32x32xf32>
    %c728 = arith.constant 728 : index
    %c0_87 = arith.constant 0 : index
    %162 = vector.load %arg7[%c728, %c0_87] : memref<1096x128xf32, #tpu.memory_space<vmem>>, vector<32x32xf32>
    %163 = vector.extract_strided_slice %146 {offsets = [4, 0], sizes = [32, 32], strides = [1, 1]} : vector<40x32xf32> to vector<32x32xf32>
    %cst_88 = arith.constant dense<0.000000e+00> : vector<32x32xf32>
    %164 = tpu.matmul %163, %162, %cst_88 {dimension_numbers = #tpu.dot_dimension_numbers<[1], [0], [0], [1], [0, 0, 1, 1], [], []>} : vector<32x32xf32>, vector<32x32xf32>, vector<32x32xf32> -> vector<32x32xf32>
    %165 = arith.addf %161, %164 : vector<32x32xf32>
    %c760 = arith.constant 760 : index
    %c0_89 = arith.constant 0 : index
    %166 = vector.load %arg7[%c760, %c0_89] : memref<1096x128xf32, #tpu.memory_space<vmem>>, vector<32x32xf32>
    %167 = vector.extract_strided_slice %146 {offsets = [5, 0], sizes = [32, 32], strides = [1, 1]} : vector<40x32xf32> to vector<32x32xf32>
    %cst_90 = arith.constant dense<0.000000e+00> : vector<32x32xf32>
    %168 = tpu.matmul %167, %166, %cst_90 {dimension_numbers = #tpu.dot_dimension_numbers<[1], [0], [0], [1], [0, 0, 1, 1], [], []>} : vector<32x32xf32>, vector<32x32xf32>, vector<32x32xf32> -> vector<32x32xf32>
    %169 = arith.addf %165, %168 : vector<32x32xf32>
    %c808 = arith.constant 808 : index
    %c0_91 = arith.constant 0 : index
    %170 = vector.load %arg7[%c808, %c0_91] : memref<1096x128xf32, #tpu.memory_space<vmem>>, vector<1x32xf32>
    %171 = vector.broadcast %170 : vector<1x32xf32> to vector<32x32xf32>
    %172 = arith.addf %169, %171 : vector<32x32xf32>
    %cst_92 = arith.constant 0.000000e+00 : f32
    %173 = vector.broadcast %cst_92 : f32 to vector<32x32xf32>
    %174 = arith.maximumf %172, %173 : vector<32x32xf32>
    %175 = vector.extract_strided_slice %174 {offsets = [0, 0], sizes = [1, 32], strides = [1, 1]} : vector<32x32xf32> to vector<1x32xf32>
    %176 = vector.extract_strided_slice %174 {offsets = [16, 0], sizes = [1, 32], strides = [1, 1]} : vector<32x32xf32> to vector<1x32xf32>
    %177 = tpu.concatenate %175, %176 in 0 : vector<1x32xf32>, vector<1x32xf32> -> vector<2x32xf32>
    %c816 = arith.constant 816 : index
    %c0_93 = arith.constant 0 : index
    %178 = vector.load %arg7[%c816, %c0_93] : memref<1096x128xf32, #tpu.memory_space<vmem>>, vector<32x100xf32>
    %cst_94 = arith.constant dense<0.000000e+00> : vector<2x100xf32>
    %179 = tpu.matmul %177, %178, %cst_94 {dimension_numbers = #tpu.dot_dimension_numbers<[1], [0], [0], [1], [0, 0, 1, 1], [], []>} : vector<2x32xf32>, vector<32x100xf32>, vector<2x100xf32> -> vector<2x100xf32>
    %c848 = arith.constant 848 : index
    %c0_95 = arith.constant 0 : index
    %180 = vector.load %arg7[%c848, %c0_95] : memref<1096x128xf32, #tpu.memory_space<vmem>>, vector<1x100xf32>
    %181 = vector.broadcast %180 : vector<1x100xf32> to vector<2x100xf32>
    %182 = arith.addf %179, %181 : vector<2x100xf32>
    %cst_96 = arith.constant 0.000000e+00 : f32
    %183 = vector.broadcast %cst_96 : f32 to vector<2x100xf32>
    %184 = arith.maximumf %182, %183 : vector<2x100xf32>
    %c856 = arith.constant 856 : index
    %c0_97 = arith.constant 0 : index
    %185 = vector.load %arg7[%c856, %c0_97] : memref<1096x128xf32, #tpu.memory_space<vmem>>, vector<100x105xf32>
    %cst_98 = arith.constant dense<0.000000e+00> : vector<2x105xf32>
    %186 = tpu.matmul %184, %185, %cst_98 {dimension_numbers = #tpu.dot_dimension_numbers<[1], [0], [0], [1], [0, 0, 1, 1], [], []>} : vector<2x100xf32>, vector<100x105xf32>, vector<2x105xf32> -> vector<2x105xf32>
    %c0_99 = arith.constant 0 : index
    %c0_100 = arith.constant 0 : index
    %187 = vector.load %arg2[%c0_99, %c0_100] : memref<2x5xf32, #tpu.memory_space<vmem>>, vector<2x5xf32>
    %c960 = arith.constant 960 : index
    %c0_101 = arith.constant 0 : index
    %188 = vector.load %arg7[%c960, %c0_101] : memref<1096x128xf32, #tpu.memory_space<vmem>>, vector<5x105xf32>
    %cst_102 = arith.constant dense<0.000000e+00> : vector<2x105xf32>
    %189 = tpu.matmul %187, %188, %cst_102 {dimension_numbers = #tpu.dot_dimension_numbers<[1], [0], [0], [1], [0, 0, 1, 1], [], []>} : vector<2x5xf32>, vector<5x105xf32>, vector<2x105xf32> -> vector<2x105xf32>
    %190 = arith.addf %186, %189 : vector<2x105xf32>
    %c968 = arith.constant 968 : index
    %c0_103 = arith.constant 0 : index
    %191 = vector.load %arg7[%c968, %c0_103] : memref<1096x128xf32, #tpu.memory_space<vmem>>, vector<1x105xf32>
    %192 = vector.broadcast %191 : vector<1x105xf32> to vector<2x105xf32>
    %193 = arith.addf %190, %192 : vector<2x105xf32>
    %cst_104 = arith.constant 0.000000e+00 : f32
    %194 = vector.broadcast %cst_104 : f32 to vector<2x105xf32>
    %195 = arith.maximumf %193, %194 : vector<2x105xf32>
    %c976 = arith.constant 976 : index
    %c0_105 = arith.constant 0 : index
    %196 = vector.load %arg7[%c976, %c0_105] : memref<1096x128xf32, #tpu.memory_space<vmem>>, vector<105x3xf32>
    %cst_106 = arith.constant dense<0.000000e+00> : vector<2x3xf32>
    %197 = tpu.matmul %195, %196, %cst_106 {dimension_numbers = #tpu.dot_dimension_numbers<[1], [0], [0], [1], [0, 0, 1, 1], [], []>} : vector<2x105xf32>, vector<105x3xf32>, vector<2x3xf32> -> vector<2x3xf32>
    %c1088 = arith.constant 1088 : index
    %c0_107 = arith.constant 0 : index
    %198 = vector.load %arg7[%c1088, %c0_107] : memref<1096x128xf32, #tpu.memory_space<vmem>>, vector<1x3xf32>
    %199 = vector.broadcast %198 : vector<1x3xf32> to vector<2x3xf32>
    %200 = arith.addf %197, %199 : vector<2x3xf32>
    %cst_108 = arith.constant dense<0xFF800000> : vector<2xf32>
    %201 = vector.multi_reduction <maximumf>, %200, %cst_108 [1] : vector<2x3xf32> to vector<2xf32>
    %202 = vector.shape_cast %201 : vector<2xf32> to vector<2x1xf32>
    %203 = vector.broadcast %202 : vector<2x1xf32> to vector<2x3xf32>
    %204 = arith.subf %200, %203 : vector<2x3xf32>
    %205 = math.exp %204 : vector<2x3xf32>
    %cst_109 = arith.constant dense<0.000000e+00> : vector<2xf32>
    %206 = vector.multi_reduction <add>, %205, %cst_109 [1] : vector<2x3xf32> to vector<2xf32>
    %207 = vector.shape_cast %206 : vector<2xf32> to vector<2x1xf32>
    %208 = tpu.reciprocal %207 {approx = true} : vector<2x1xf32> -> vector<2x1xf32>
    %209 = arith.mulf %207, %208 : vector<2x1xf32>
    %cst_110 = arith.constant 2.000000e+00 : f32
    %210 = vector.broadcast %cst_110 : f32 to vector<2x1xf32>
    %211 = arith.subf %210, %209 : vector<2x1xf32>
    %212 = arith.mulf %208, %211 : vector<2x1xf32>
    %213 = vector.broadcast %212 : vector<2x1xf32> to vector<2x3xf32>
    %214 = arith.mulf %205, %213 : vector<2x3xf32>
    %c0_111 = arith.constant 0 : index
    %c0_112 = arith.constant 0 : index
    %215 = vector.load %arg8[%c0_111, %c0_112] : memref<2x3xf32, #tpu.memory_space<vmem>>, vector<2x3xf32>
    tpu.vector_store %arg8[%c0_111, %c0_112], %214 {strides = array<i32>} : memref<2x3xf32, #tpu.memory_space<vmem>>, vector<2x3xf32>,
    return
  }
}

</mosaic_0001>

<llo_original>
// kernel: forward.1
$region0: #{forward.1}
  #allocation0 [shape = 'u32[]', space=smem, size = 0x4, offset = 0x4, fixed_abs, tag = 'smem constant byte address 0x4 - core index']
  #allocation1 [shape = 'u32[72,128]{1,0:T(1,128)}', space=vmem, size = 0x9000, scoped, tag = 'internal scratch']
  %s0 = inlined_call_operand.vmem [shape: f32[2,16], index: 0, kind: input, shape index: {}]
  %s1 = inlined_call_operand.vmem [shape: f32[2,4], index: 1, kind: input, shape index: {}]
  %s2 = inlined_call_operand.vmem [shape: f32[2,5], index: 2, kind: input, shape index: {}]
  %s3 = inlined_call_operand.vmem [shape: f32[32,8], index: 3, kind: input, shape index: {}]
  %s4 = inlined_call_operand.vmem [shape: f32[8,32], index: 4, kind: input, shape index: {}]
  %s5 = inlined_call_operand.vmem [shape: f32[48,256], index: 5, kind: input, shape index: {}]
  %s6 = inlined_call_operand.vmem [shape: f32[560,64], index: 6, kind: input, shape index: {}]
  %s7 = inlined_call_operand.hbm [shape: f32[1096,128], index: 7, kind: input, shape index: {}]
  %s8 = inlined_call_operand.hbm [shape: f32[2,3], index: 8, kind: output, shape index: {}]
  %s9 = sld [smem:[#allocation0]]
  $region46: #{forward.1} parent=0
    _
  %s11 = ssub.s32 1, %s9
  %s12 = scalar_select 0, %s11, %s9
  $region1: #{forward.1} parent=0
    #allocation2 [shape = 'u8[561152]{0}', space=vmem, size = 0x89000, scoped, tag = 'input window, operand 7, single buffered']
    #allocation3 [shape = 's32[1]{0}', space=sflag, size = 0x4, scoped, tag = 'scoped memory for forward.1']
    #allocation4 [shape = 's32[1]{0}', space=sflag, size = 0x4, scoped, tag = 'scoped memory for forward.1']
    #allocation5 [shape = 'u8[1024]{0}', space=vmem, size = 0x400, scoped, tag = 'output window, operand 0, single buffered']
    %13 = vsyncpa [#allocation3], 0
    %14 = vsyncpa [#allocation4], 0
    // Predicated region
    $region2: #{forward.1} parent=1 // pred_check
      _
    $region3: #{forward.1} parent=1 // pred_check_branch
      %16 = sbr.rel (0) target = $region5
    $region4: #{forward.1} parent=1 // pred_region
      _
    $region5: #{forward.1} parent=1 // pred_fallthru
      _
    // Predicated region
    $region6: #{forward.1} parent=1 // pred_check
      _
    $region7: #{forward.1} parent=1 // pred_check_branch
      %18 = sbr.rel (0) target = $region9
    $region8: #{forward.1} parent=1 // pred_region
      _
    $region9: #{forward.1} parent=1 // pred_fallthru
      _
    // Predicated region
    $region10: #{forward.1} parent=1 // pred_check
      _
    $region11: #{forward.1} parent=1 // pred_check_branch
      %20 = sbr.rel (0) target = $region13
    $region12: #{forward.1} parent=1 // pred_region
      _
    $region13: #{forward.1} parent=1 // pred_fallthru
      _
    // Predicated region
    $region14: #{forward.1} parent=1 // pred_check
      _
    $region15: #{forward.1} parent=1 // pred_check_branch
      %22 = sbr.rel (0) target = $region17
    $region16: #{forward.1} parent=1 // pred_region
      _
    $region17: #{forward.1} parent=1 // pred_fallthru
      _
    // Predicated region
    $region18: #{forward.1} parent=1 // pred_check
      _
    $region19: #{forward.1} parent=1 // pred_check_branch
      %24 = sbr.rel (0) target = $region21
    $region20: #{forward.1} parent=1 // pred_region
      _
    $region21: #{forward.1} parent=1 // pred_fallthru
      _
    // Predicated region
    $region22: #{forward.1} parent=1 // pred_check
      _
    $region23: #{forward.1} parent=1 // pred_check_branch
      %26 = sbr.rel (0) target = $region25
    $region24: #{forward.1} parent=1 // pred_region
      _
    $region25: #{forward.1} parent=1 // pred_fallthru
      _
    // Predicated region
    $region26: #{forward.1} parent=1 // pred_check
      _
    $region27: #{forward.1} parent=1 // pred_check_branch
      %28 = sbr.rel (0) target = $region29
    $region28: #{forward.1} parent=1 // pred_region
      _
    $region29: #{forward.1} parent=1 // pred_fallthru
      _
    // Predicated region
    $region30: #{forward.1} parent=1 // pred_check
      _
    $region31: #{forward.1} parent=1 // pred_check_branch
      %30 = sbr.rel (0) target = $region33
    $region32: #{forward.1} parent=1 // pred_region
      %32 = vsyncadd [#allocation3], 0
      %s33 = sshll.u32 %s7, 4
      %s34 = int_to_ptr.hbm [resolvable:$true] %s33
      %s35 = sshll.u32 [#allocation2], 4
      %s36 = int_to_ptr.vmem [resolvable:$true] %s35
      %41 = dma.hbm_to_vmem [thread:$0]  %s34, 17536, %s36, [#allocation3], 128, 128, 8
    $region33: #{forward.1} parent=1 // pred_fallthru
      _
    // Predicated region
    $region34: #{forward.1} parent=1 // pred_check
      _
    $region35: #{forward.1} parent=1 // pred_check_branch
      %43 = sbr.rel (0) target = $region37
    $region36: #{forward.1} parent=1 // pred_region
      %45 = dma.done [#allocation3], 17536
    $region37: #{forward.1} parent=1 // pred_fallthru
      _
    %v46 = vld [vmem:[%s0] sm:$0x3]
    %v47 = vld [vmem:[%s1] sm:$0x3]
    %v48 = vld [vmem:[%s3] sm:$0xff]
    %v49 = vld [vmem:[%s3 + $0x8] sm:$0xff]
    %v50 = vld [vmem:[%s3 + $0x10] sm:$0xff]
    %v51 = vld [vmem:[%s3 + $0x18] sm:$0xff]
    %v52 = vld [vmem:[%s4] sm:$0xff]
    %v53 = vld [vmem:[%s6] sm:$0xff]
    %v54 = vld [vmem:[%s6 + $0x8] sm:$0xff]
    %v55 = vld [vmem:[%s6 + $0x10] sm:$0xff]
    %v56 = vld [vmem:[%s6 + $0x18] sm:$0xff]
    %vm57 = vcmask 15360
    %v59 = vsel %vm57, %v53, 0
    %v62 = vsel %vm57, %v54, 0
    %v65 = vsel %vm57, %v55, 0
    %v68 = vsel %vm57, %v56, 0
    %vm70 = vcmask 1041408
    %v72 = vsel %vm70, %v46, 0
    %74 = vmatpush.msra.mxu0 0.0
    %75 = vmatpush.msra.mxu0 0.0
    %76 = vmatpush.msra.mxu0 0.0
    %77 = vmatpush.msra.mxu0 0.0
    %78 = vmatpush.msra.mxu0 0.0
    %79 = vmatpush.msra.mxu0 0.0
    %80 = vmatpush.msra.mxu0 0.0
    %81 = vmatpush.msra.mxu0 0.0
    %82 = vmatpush.msra.mxu0 0.0
    %83 = vmatpush.msra.mxu0 0.0
    %84 = vmatpush.msra.mxu0 0.0
    %85 = vmatpush.msra.mxu0 0.0
    %86 = vmatpush.msra.mxu0 0.0
    %87 = vmatpush.msra.mxu0 0.0
    %88 = vmatpush.msra.mxu0 0.0
    %89 = vmatpush.msra.mxu0 %v72
    %90 = vmatmul.f32.gmra.mxu0 %v59
    %v91 = vpop.f32.mrf.mxu0
    %v92 = vadd.f32 0.0, %v91
    %93 = vmatmul.f32.gmra.mxu0 %v62
    %v94 = vpop.f32.mrf.mxu0
    %v95 = vadd.f32 0.0, %v94
    %96 = vmatmul.f32.gmra.mxu0 %v65
    %v97 = vpop.f32.mrf.mxu0
    %v98 = vadd.f32 0.0, %v97
    %99 = vmatmul.f32.gmra.mxu0 %v68
    %v100 = vpop.f32.mrf.mxu0
    %v101 = vadd.f32 0.0, %v100
    %102 = vdwg.mxu0
    %v103 = vld [vmem:[%s5] sm:$0xff]
    %v104 = vld [vmem:[%s5 + $0x8] sm:$0xff]
    %v105 = vld [vmem:[%s5 + $0x10] sm:$0xff]
    %v106 = vld [vmem:[%s5 + $0x18] sm:$0xff]
    %vm107 = vcmask 130048
    %v109 = vsel %vm107, %v92, 0
    %v112 = vsel %vm107, %v95, 0
    %v115 = vsel %vm107, %v98, 0
    %v118 = vsel %vm107, %v101, 0
    %120 = vmatpush.msra.mxu0 0.0
    %121 = vmatpush.msra.mxu0 0.0
    %122 = vmatpush.msra.mxu0 0.0
    %123 = vmatpush.msra.mxu0 0.0
    %124 = vmatpush.msra.mxu0 0.0
    %125 = vmatpush.msra.mxu0 0.0
    %126 = vmatpush.msra.mxu0 0.0
    %127 = vmatpush.msra.mxu0 0.0
    %128 = vmatpush.msra.mxu0 0.0
    %129 = vmatpush.msra.mxu0 0.0
    %130 = vmatpush.msra.mxu0 0.0
    %131 = vmatpush.msra.mxu0 0.0
    %132 = vmatpush.msra.mxu0 0.0
    %133 = vmatpush.msra.mxu0 0.0
    %134 = vmatpush.msra.mxu0 %v105
    %135 = vmatpush.msra.mxu0 %v103
    %136 = vmatmul.f32.gmra.mxu0 %v109
    %v137 = vpop.f32.mrf.mxu0
    %v138 = vadd.f32 0.0, %v137
    %139 = vmatmul.f32.gmra.mxu0 %v112
    %v140 = vpop.f32.mrf.mxu0
    %v141 = vadd.f32 0.0, %v140
    %142 = vmatmul.f32.gmra.mxu0 %v115
    %v143 = vpop.f32.mrf.mxu0
    %v144 = vadd.f32 0.0, %v143
    %145 = vmatmul.f32.gmra.mxu0 %v118
    %v146 = vpop.f32.mrf.mxu0
    %v147 = vadd.f32 0.0, %v146
    %148 = vdwg.mxu0
    %149 = vmatpush.msra.mxu0 0.0
    %150 = vmatpush.msra.mxu0 0.0
    %151 = vmatpush.msra.mxu0 0.0
    %152 = vmatpush.msra.mxu0 0.0
    %153 = vmatpush.msra.mxu0 0.0
    %154 = vmatpush.msra.mxu0 0.0
    %155 = vmatpush.msra.mxu0 0.0
    %156 = vmatpush.msra.mxu0 0.0
    %157 = vmatpush.msra.mxu0 0.0
    %158 = vmatpush.msra.mxu0 0.0
    %159 = vmatpush.msra.mxu0 0.0
    %160 = vmatpush.msra.mxu0 0.0
    %161 = vmatpush.msra.mxu0 0.0
    %162 = vmatpush.msra.mxu0 0.0
    %163 = vmatpush.msra.mxu0 %v106
    %164 = vmatpush.msra.mxu0 %v104
    %165 = vmatmul.f32.gmra.mxu0 %v109
    %v166 = vpop.f32.mrf.mxu0
    %v167 = vadd.f32 0.0, %v166
    %168 = vmatmul.f32.gmra.mxu0 %v112
    %v169 = vpop.f32.mrf.mxu0
    %v170 = vadd.f32 0.0, %v169
    %171 = vmatmul.f32.gmra.mxu0 %v115
    %v172 = vpop.f32.mrf.mxu0
    %v173 = vadd.f32 0.0, %v172
    %174 = vmatmul.f32.gmra.mxu0 %v118
    %v175 = vpop.f32.mrf.mxu0
    %v176 = vadd.f32 0.0, %v175
    %177 = vdwg.mxu0
    %v178 = vld [vmem:[%s5 + $0x20] sm:$0xff]
    %v179 = vld [vmem:[%s5 + $0x28] sm:$0xff]
    %v180 = vld [vmem:[%s5 + $0x30] sm:$0xff]
    %v181 = vld [vmem:[%s5 + $0x38] sm:$0xff]
    %v182 = vld [vmem:[%s5 + $0x40] sm:$0xff]
    %v183 = vld [vmem:[%s5 + $0x48] sm:$0xff]
    %v184 = vld [vmem:[%s5 + $0x50] sm:$0xff]
    %v185 = vld [vmem:[%s5 + $0x58] sm:$0xff]
    %v186 = vmul.f32 %v138, %v178
    %v187 = vmul.f32 %v167, %v179
    %v188 = vmul.f32 %v141, %v180
    %v189 = vmul.f32 %v170, %v181
    %v190 = vmul.f32 %v144, %v182
    %v191 = vmul.f32 %v173, %v183
    %v192 = vmul.f32 %v147, %v184
    %v193 = vmul.f32 %v176, %v185
    %v194 = vld [vmem:[%s6 + $0x38] sm:$0xff]
    %v195 = vld [vmem:[%s6 + $0x40] sm:$0xff]
    %v196 = vld [vmem:[%s6 + $0x48] sm:$0xff]
    %v197 = vld [vmem:[%s6 + $0x50] sm:$0xff]
    %v198 = vld [vmem:[%s6 + $0x58] sm:$0xff]
    %v199 = vld [vmem:[%s6 + $0x60] sm:$0xff]
    %v200 = vld [vmem:[%s6 + $0x68] sm:$0xff]
    %v201 = vld [vmem:[%s6 + $0x70] sm:$0xff]
    %v202 = vld [vmem:[%s6 + $0x78] sm:$0xff]
    %v203 = vld [vmem:[%s6 + $0x80] sm:$0xff]
    %v204 = vld [vmem:[%s6 + $0x88] sm:$0xff]
    %v205 = vld [vmem:[%s6 + $0x90] sm:$0xff]
    %v206 = vld [vmem:[%s6 + $0x98] sm:$0xff]
    %v207 = vld [vmem:[%s6 + $0xa0] sm:$0xff]
    %v208 = vld [vmem:[%s6 + $0xa8] sm:$0xff]
    %v209 = vld [vmem:[%s6 + $0xb0] sm:$0xff]
    %v210 = vld [vmem:[%s6 + $0xb8] sm:$0xff]
    %v211 = vld [vmem:[%s6 + $0xc0] sm:$0xff]
    %v212 = vld [vmem:[%s6 + $0xc8] sm:$0xff]
    %v213 = vld [vmem:[%s6 + $0xd0] sm:$0xff]
    %v214 = vld [vmem:[%s6 + $0xd8] sm:$0xff]
    %v215 = vld [vmem:[%s6 + $0xe0] sm:$0xff]
    %v216 = vld [vmem:[%s6 + $0xe8] sm:$0xff]
    %v217 = vld [vmem:[%s6 + $0xf0] sm:$0xff]
    %v218 = vld [vmem:[%s6 + $0xf8] sm:$0xff]
    %v219 = vld [vmem:[%s6 + $0x100] sm:$0xff]
    %v220 = vld [vmem:[%s6 + $0x108] sm:$0xff]
    %v221 = vld [vmem:[%s6 + $0x110] sm:$0xff]
    %v222 = vld [vmem:[%s6 + $0x118] sm:$0xff]
    %v223 = vld [vmem:[%s6 + $0x120] sm:$0xff]
    %v224 = vld [vmem:[%s6 + $0x128] sm:$0xff]
    %v225 = vld [vmem:[%s6 + $0x130] sm:$0xff]
    %v226 = vld [vmem:[%s6 + $0x138] sm:$0xff]
    %v227 = vld [vmem:[%s6 + $0x140] sm:$0xff]
    %v228 = vld [vmem:[%s6 + $0x148] sm:$0xff]
    %v229 = vld [vmem:[%s6 + $0x150] sm:$0xff]
    %230 = vmatpush.msra.mxu0 %v209
    %231 = vmatpush.msra.mxu0 %v208
    %232 = vmatpush.msra.mxu0 %v207
    %233 = vmatpush.msra.mxu0 %v206
    %234 = vmatpush.msra.mxu0 %v205
    %235 = vmatpush.msra.mxu0 %v204
    %236 = vmatpush.msra.mxu0 %v203
    %237 = vmatpush.msra.mxu0 %v202
    %238 = vmatpush.msra.mxu0 %v201
    %239 = vmatpush.msra.mxu0 %v200
    %240 = vmatpush.msra.mxu0 %v199
    %241 = vmatpush.msra.mxu0 %v198
    %242 = vmatpush.msra.mxu0 %v197
    %243 = vmatpush.msra.mxu0 %v196
    %244 = vmatpush.msra.mxu0 %v195
    %245 = vmatpush.msra.mxu0 %v194
    %246 = vmatmul.f32.gmra.mxu0 %v186
    %v247 = vpop.f32.mrf.mxu0
    %v248 = vadd.f32 %v226, %v247
    %249 = vmatmul.f32.gmra.mxu0 %v188
    %v250 = vpop.f32.mrf.mxu0
    %v251 = vadd.f32 %v227, %v250
    %252 = vmatmul.f32.gmra.mxu0 %v190
    %v253 = vpop.f32.mrf.mxu0
    %v254 = vadd.f32 %v228, %v253
    %255 = vmatmul.f32.gmra.mxu0 %v192
    %v256 = vpop.f32.mrf.mxu0
    %v257 = vadd.f32 %v229, %v256
    %258 = vdwg.mxu0
    %259 = vmatpush.msra.mxu0 %v225
    %260 = vmatpush.msra.mxu0 %v224
    %261 = vmatpush.msra.mxu0 %v223
    %262 = vmatpush.msra.mxu0 %v222
    %263 = vmatpush.msra.mxu0 %v221
    %264 = vmatpush.msra.mxu0 %v220
    %265 = vmatpush.msra.mxu0 %v219
    %266 = vmatpush.msra.mxu0 %v218
    %267 = vmatpush.msra.mxu0 %v217
    %268 = vmatpush.msra.mxu0 %v216
    %269 = vmatpush.msra.mxu0 %v215
    %270 = vmatpush.msra.mxu0 %v214
    %271 = vmatpush.msra.mxu0 %v213
    %272 = vmatpush.msra.mxu0 %v212
    %273 = vmatpush.msra.mxu0 %v211
    %274 = vmatpush.msra.mxu0 %v210
    %275 = vmatmul.f32.gmra.mxu0 %v187
    %v276 = vpop.f32.mrf.mxu0
    %v277 = vadd.f32 %v248, %v276
    %278 = vmatmul.f32.gmra.mxu0 %v189
    %v279 = vpop.f32.mrf.mxu0
    %v280 = vadd.f32 %v251, %v279
    %281 = vmatmul.f32.gmra.mxu0 %v191
    %v282 = vpop.f32.mrf.mxu0
    %v283 = vadd.f32 %v254, %v282
    %284 = vmatmul.f32.gmra.mxu0 %v193
    %v285 = vpop.f32.mrf.mxu0
    %v286 = vadd.f32 %v257, %v285
    %287 = vdwg.mxu0
    %v288 = vld [vmem:[%s6 + $0x20] sm:$0xff]
    %v290 = vsel %vm57, %v288, 0
    %v293 = vsel %vm70, %v47, 0
    %295 = vmatpush.msra.mxu0 0.0
    %296 = vmatpush.msra.mxu0 0.0
    %297 = vmatpush.msra.mxu0 0.0
    %298 = vmatpush.msra.mxu0 0.0
    %299 = vmatpush.msra.mxu0 0.0
    %300 = vmatpush.msra.mxu0 0.0
    %301 = vmatpush.msra.mxu0 0.0
    %302 = vmatpush.msra.mxu0 0.0
    %303 = vmatpush.msra.mxu0 0.0
    %304 = vmatpush.msra.mxu0 0.0
    %305 = vmatpush.msra.mxu0 0.0
    %306 = vmatpush.msra.mxu0 0.0
    %307 = vmatpush.msra.mxu0 0.0
    %308 = vmatpush.msra.mxu0 0.0
    %309 = vmatpush.msra.mxu0 0.0
    %310 = vmatpush.msra.mxu0 %v293
    %311 = vmatmul.f32.gmra.mxu0 %v290
    %v312 = vpop.f32.mrf.mxu0
    %v313 = vadd.f32 0.0, %v312
    %314 = vdwg.mxu0
    %v315 = vld [vmem:[%s6 + $0x28] sm:$0xf]
    %vm316 = vcmask 31744
    %v318 = vsel %vm316, %v313, 0
    %vm320 = vcmask 1043456
    %v322 = vsel %vm320, %v315, 0
    %324 = vmatpush.msra.mxu0 0.0
    %325 = vmatpush.msra.mxu0 0.0
    %326 = vmatpush.msra.mxu0 0.0
    %327 = vmatpush.msra.mxu0 0.0
    %328 = vmatpush.msra.mxu0 0.0
    %329 = vmatpush.msra.mxu0 0.0
    %330 = vmatpush.msra.mxu0 0.0
    %331 = vmatpush.msra.mxu0 0.0
    %332 = vmatpush.msra.mxu0 0.0
    %333 = vmatpush.msra.mxu0 0.0
    %334 = vmatpush.msra.mxu0 0.0
    %335 = vmatpush.msra.mxu0 0.0
    %336 = vmatpush.msra.mxu0 0.0
    %337 = vmatpush.msra.mxu0 0.0
    %338 = vmatpush.msra.mxu0 0.0
    %339 = vmatpush.msra.mxu0 %v322
    %340 = vmatmul.f32.gmra.mxu0 %v318
    %v341 = vpop.f32.mrf.mxu0
    %v342 = vadd.f32 0.0, %v341
    %343 = vdwg.mxu0
    %v344 = vld [vmem:[%s6 + $0x30] sm:$0xff]
    %v345 = vmul.f32 %v342, %v344
    %v346 = vld [vmem:[#allocation2] sm:$0xff]
    %v347 = vld [vmem:[#allocation2 + $0x8] sm:$0xff]
    %v348 = vld [vmem:[#allocation2 + $0x10] sm:$0xff]
    %v350 = vsel %vm107, %v345, 0
    %352 = vmatpush.msra.mxu0 0.0
    %353 = vmatpush.msra.mxu0 0.0
    %354 = vmatpush.msra.mxu0 0.0
    %355 = vmatpush.msra.mxu0 0.0
    %356 = vmatpush.msra.mxu0 0.0
    %357 = vmatpush.msra.mxu0 0.0
    %358 = vmatpush.msra.mxu0 0.0
    %359 = vmatpush.msra.mxu0 0.0
    %360 = vmatpush.msra.mxu0 0.0
    %361 = vmatpush.msra.mxu0 0.0
    %362 = vmatpush.msra.mxu0 0.0
    %363 = vmatpush.msra.mxu0 0.0
    %364 = vmatpush.msra.mxu0 0.0
    %365 = vmatpush.msra.mxu0 0.0
    %366 = vmatpush.msra.mxu0 %v347
    %367 = vmatpush.msra.mxu0 %v346
    %368 = vmatmul.f32.gmra.mxu0 %v350
    %v369 = vpop.f32.mrf.mxu0
    %v370 = vadd.f32 %v348, %v369
    %371 = vdwg.mxu0
    %vm372 = vcmask 64512
    %v374 = vsel %vm372, %v48, 0
    %v377 = vsel %vm372, %v49, 0
    %v380 = vsel %vm372, %v50, 0
    %v383 = vsel %vm372, %v51, 0
    %385 = vmatpush.msra.mxu0 0.0
    %386 = vmatpush.msra.mxu0 0.0
    %387 = vmatpush.msra.mxu0 0.0
    %388 = vmatpush.msra.mxu0 0.0
    %389 = vmatpush.msra.mxu0 0.0
    %390 = vmatpush.msra.mxu0 0.0
    %391 = vmatpush.msra.mxu0 0.0
    %392 = vmatpush.msra.mxu0 0.0
    %393 = vmatpush.msra.mxu0 0.0
    %394 = vmatpush.msra.mxu0 0.0
    %395 = vmatpush.msra.mxu0 0.0
    %396 = vmatpush.msra.mxu0 0.0
    %397 = vmatpush.msra.mxu0 0.0
    %398 = vmatpush.msra.mxu0 0.0
    %399 = vmatpush.msra.mxu0 0.0
    %400 = vmatpush.msra.mxu0 %v370
    %401 = vmatmul.f32.gmra.mxu0 %v374
    %v402 = vpop.f32.mrf.mxu0
    %v403 = vadd.f32 %v277, %v402
    %404 = vmatmul.f32.gmra.mxu0 %v377
    %v405 = vpop.f32.mrf.mxu0
    %v406 = vadd.f32 %v280, %v405
    %407 = vmatmul.f32.gmra.mxu0 %v380
    %v408 = vpop.f32.mrf.mxu0
    %v409 = vadd.f32 %v283, %v408
    %410 = vmatmul.f32.gmra.mxu0 %v383
    %v411 = vpop.f32.mrf.mxu0
    %v412 = vadd.f32 %v286, %v411
    %413 = vdwg.mxu0
    %v414 = vmax.f32 %v403, 0.0
    %v415 = vmax.f32 %v406, 0.0
    %v416 = vmax.f32 %v409, 0.0
    %v417 = vmax.f32 %v412, 0.0
    %vm418 = vcmask 261120
    %v420 = vsel %vm418, %v52, 0
    %422 = vmatpush.msra.mxu0 0.0
    %423 = vmatpush.msra.mxu0 0.0
    %424 = vmatpush.msra.mxu0 0.0
    %425 = vmatpush.msra.mxu0 0.0
    %426 = vmatpush.msra.mxu0 0.0
    %427 = vmatpush.msra.mxu0 0.0
    %428 = vmatpush.msra.mxu0 0.0
    %429 = vmatpush.msra.mxu0 0.0
    %430 = vmatpush.msra.mxu0 0.0
    %431 = vmatpush.msra.mxu0 0.0
    %432 = vmatpush.msra.mxu0 0.0
    %433 = vmatpush.msra.mxu0 0.0
    %434 = vmatpush.msra.mxu0 %v417
    %435 = vmatpush.msra.mxu0 %v416
    %436 = vmatpush.msra.mxu0 %v415
    %437 = vmatpush.msra.mxu0 %v414
    %438 = vmatmul.f32.gmra.mxu0 %v420
    %v439 = vpop.f32.mrf.mxu0
    %v440 = vadd.f32 0.0, %v439
    %441 = vdwg.mxu0
    %v442 = vld [vmem:[%s6 + $0x158] sm:$0xff]
    %v443 = vld [vmem:[%s6 + $0x160] sm:$0xff]
    %v444 = vld [vmem:[%s6 + $0x168] sm:$0xff]
    %v445 = vld [vmem:[%s6 + $0x170] sm:$0xff]
    %v446 = vld [vmem:[%s6 + $0x178] sm:$0xff]
    %v447 = vld [vmem:[%s6 + $0x180] sm:$0xff]
    %v448 = vld [vmem:[%s6 + $0x188] sm:$0xff]
    %v449 = vld [vmem:[%s6 + $0x190] sm:$0xff]
    %451 = vrot.lane.b32.xlu0 %v370, 64
    %v452 = vpop.permute.xlu0 %451
    %vm454 = vcmask 523264
    %v456 = vsel %vm454, %v440, 0
    %458 = vmatpush.msra.mxu0 0.0
    %459 = vmatpush.msra.mxu0 0.0
    %460 = vmatpush.msra.mxu0 0.0
    %461 = vmatpush.msra.mxu0 0.0
    %462 = vmatpush.msra.mxu0 0.0
    %463 = vmatpush.msra.mxu0 0.0
    %464 = vmatpush.msra.mxu0 0.0
    %465 = vmatpush.msra.mxu0 0.0
    %466 = vmatpush.msra.mxu0 %v449
    %467 = vmatpush.msra.mxu0 %v448
    %468 = vmatpush.msra.mxu0 %v447
    %469 = vmatpush.msra.mxu0 %v446
    %470 = vmatpush.msra.mxu0 %v445
    %471 = vmatpush.msra.mxu0 %v444
    %472 = vmatpush.msra.mxu0 %v443
    %473 = vmatpush.msra.mxu0 %v442
    %474 = vmatmul.f32.gmra.mxu0 %v456
    %v475 = vpop.f32.mrf.mxu0
    %v476 = vadd.f32 %v452, %v475
    %477 = vdwg.mxu0
    %v478 = vmax.f32 %v476, 0.0
    %v479 = vsel %vm454, %v414, 0.0
    %480 = vadd.xlane.f32.xlu0 %v479
    %v481 = vpop.xlane.xlu0 %480
    %v482 = vsel %vm454, %v415, 0.0
    %483 = vadd.xlane.f32.xlu0 %v482
    %v484 = vpop.xlane.xlu0 %483
    %v485 = vsel %vm454, %v416, 0.0
    %486 = vadd.xlane.f32.xlu0 %v485
    %v487 = vpop.xlane.xlu0 %486
    %v488 = vsel %vm454, %v417, 0.0
    %489 = vadd.xlane.f32.xlu0 %v488
    %v490 = vpop.xlane.xlu0 %489
    %v491 = vsel %vm454, %v478, 0.0
    %492 = vadd.xlane.f32.xlu0 %v491
    %v493 = vpop.xlane.xlu0 %492
    %v494 = vrcp.pop 64.0
    %v495 = vmul.f32 64.0, %v494
    %v496 = vsub.f32 1.0, %v495
    %v497 = vmul.f32 %v494, %v496
    %v498 = vadd.f32 %v494, %v497
    %vm499 = vweird.f32 %v494
    %v500 = vsel %vm499, %v494, %v498
    %v501 = vmul.f32 %v481, %v500
    %v502 = vmul.f32 %v484, %v500
    %v503 = vmul.f32 %v487, %v500
    %v504 = vmul.f32 %v490, %v500
    %v505 = vmul.f32 %v493, %v500
    %v506 = vsub.f32 %v414, %v501
    %v507 = vsub.f32 %v415, %v502
    %v508 = vsub.f32 %v416, %v503
    %v509 = vsub.f32 %v417, %v504
    %v510 = vsub.f32 %v478, %v505
    %v511 = vmul.f32 %v506, %v506
    %v512 = vmul.f32 %v507, %v507
    %v513 = vmul.f32 %v508, %v508
    %v514 = vmul.f32 %v509, %v509
    %v515 = vmul.f32 %v510, %v510
    %v516 = vsel %vm454, %v511, 0.0
    %517 = vadd.xlane.f32.xlu0 %v516
    %v518 = vpop.xlane.xlu0 %517
    %v519 = vsel %vm454, %v512, 0.0
    %520 = vadd.xlane.f32.xlu0 %v519
    %v521 = vpop.xlane.xlu0 %520
    %v522 = vsel %vm454, %v513, 0.0
    %523 = vadd.xlane.f32.xlu0 %v522
    %v524 = vpop.xlane.xlu0 %523
    %v525 = vsel %vm454, %v514, 0.0
    %526 = vadd.xlane.f32.xlu0 %v525
    %v527 = vpop.xlane.xlu0 %526
    %v528 = vsel %vm454, %v515, 0.0
    %529 = vadd.xlane.f32.xlu0 %v528
    %v530 = vpop.xlane.xlu0 %529
    %v531 = vmul.f32 %v518, %v500
    %v532 = vmul.f32 %v521, %v500
    %v533 = vmul.f32 %v524, %v500
    %v534 = vmul.f32 %v527, %v500
    %v535 = vmul.f32 %v530, %v500
    %v536 = vadd.f32 %v531, 1e-05
    %v537 = vadd.f32 %v532, 1e-05
    %v538 = vadd.f32 %v533, 1e-05
    %v539 = vadd.f32 %v534, 1e-05
    %v540 = vadd.f32 %v535, 1e-05
    %v541 = vrsqrt.pop %v536
    %v542 = vmul.f32 %v541, %v536
    %v543 = vmul.f32 %v542, %v541
    %v544 = vmul.f32 0.5, %v543
    %v545 = vsub.f32 1.5, %v544
    %v546 = vmul.f32 %v541, %v545
    %vm547 = vweird.f32 %v536
    %vm548 = vweird.f32 %v541
    %vm549 = vmor %vm547, %vm548
    %v550 = vsel %vm549, %v541, %v546
    %v551 = vrsqrt.pop %v537
    %v552 = vmul.f32 %v551, %v537
    %v553 = vmul.f32 %v552, %v551
    %v554 = vmul.f32 0.5, %v553
    %v555 = vsub.f32 1.5, %v554
    %v556 = vmul.f32 %v551, %v555
    %vm557 = vweird.f32 %v537
    %vm558 = vweird.f32 %v551
    %vm559 = vmor %vm557, %vm558
    %v560 = vsel %vm559, %v551, %v556
    %v561 = vrsqrt.pop %v538
    %v562 = vmul.f32 %v561, %v538
    %v563 = vmul.f32 %v562, %v561
    %v564 = vmul.f32 0.5, %v563
    %v565 = vsub.f32 1.5, %v564
    %v566 = vmul.f32 %v561, %v565
    %vm567 = vweird.f32 %v538
    %vm568 = vweird.f32 %v561
    %vm569 = vmor %vm567, %vm568
    %v570 = vsel %vm569, %v561, %v566
    %v571 = vrsqrt.pop %v539
    %v572 = vmul.f32 %v571, %v539
    %v573 = vmul.f32 %v572, %v571
    %v574 = vmul.f32 0.5, %v573
    %v575 = vsub.f32 1.5, %v574
    %v576 = vmul.f32 %v571, %v575
    %vm577 = vweird.f32 %v539
    %vm578 = vweird.f32 %v571
    %vm579 = vmor %vm577, %vm578
    %v580 = vsel %vm579, %v571, %v576
    %v581 = vrsqrt.pop %v540
    %v582 = vmul.f32 %v581, %v540
    %v583 = vmul.f32 %v582, %v581
    %v584 = vmul.f32 0.5, %v583
    %v585 = vsub.f32 1.5, %v584
    %v586 = vmul.f32 %v581, %v585
    %vm587 = vweird.f32 %v540
    %vm588 = vweird.f32 %v581
    %vm589 = vmor %vm587, %vm588
    %v590 = vsel %vm589, %v581, %v586
    %v591 = vmul.f32 %v506, %v550
    %v592 = vmul.f32 %v507, %v560
    %v593 = vmul.f32 %v508, %v570
    %v594 = vmul.f32 %v509, %v580
    %v595 = vmul.f32 %v510, %v590
    %v596 = vld [vmem:[%s6 + $0x198] sm:$0x1]
    %v597 = vperm.slane %v596, 0
    %v598 = vmul.f32 %v591, %v597
    %v599 = vmul.f32 %v592, %v597
    %v600 = vmul.f32 %v593, %v597
    %v601 = vmul.f32 %v594, %v597
    %v602 = vmul.f32 %v595, %v597
    %v603 = vld [vmem:[%s6 + $0x1a0] sm:$0x1]
    %v604 = vperm.slane %v603, 0
    %v605 = vadd.f32 %v598, %v604
    %v606 = vadd.f32 %v599, %v604
    %v607 = vadd.f32 %v600, %v604
    %v608 = vadd.f32 %v601, %v604
    %v609 = vadd.f32 %v602, %v604
    %v610 = vld [vmem:[%s6 + $0x1a8] sm:$0xff]
    %v611 = vld [vmem:[%s6 + $0x1b0] sm:$0xff]
    %v612 = vld [vmem:[%s6 + $0x1b8] sm:$0xff]
    %v613 = vld [vmem:[%s6 + $0x1c0] sm:$0xff]
    %v614 = vld [vmem:[%s6 + $0x1c8] sm:$0xff]
    %v615 = vld [vmem:[%s6 + $0x1d0] sm:$0xff]
    %v616 = vld [vmem:[%s6 + $0x1d8] sm:$0xff]
    %v617 = vld [vmem:[%s6 + $0x1e0] sm:$0xff]
    %v619 = vsel %vm454, %v609, 0
    %621 = vmatpush.msra.mxu0 0.0
    %622 = vmatpush.msra.mxu0 0.0
    %623 = vmatpush.msra.mxu0 0.0
    %624 = vmatpush.msra.mxu0 0.0
    %625 = vmatpush.msra.mxu0 0.0
    %626 = vmatpush.msra.mxu0 0.0
    %627 = vmatpush.msra.mxu0 0.0
    %628 = vmatpush.msra.mxu0 0.0
    %629 = vmatpush.msra.mxu0 %v617
    %630 = vmatpush.msra.mxu0 %v616
    %631 = vmatpush.msra.mxu0 %v615
    %632 = vmatpush.msra.mxu0 %v614
    %633 = vmatpush.msra.mxu0 %v613
    %634 = vmatpush.msra.mxu0 %v612
    %635 = vmatpush.msra.mxu0 %v611
    %636 = vmatpush.msra.mxu0 %v610
    %637 = vmatmul.f32.gmra.mxu0 %v619
    %v638 = vpop.f32.mrf.mxu0
    %v639 = vadd.f32 0.0, %v638
    %640 = vdwg.mxu0
    %v641 = vld [vmem:[%s6 + $0x1e8] sm:$0xff]
    %v642 = vld [vmem:[%s6 + $0x1f0] sm:$0xff]
    %v643 = vld [vmem:[%s6 + $0x1f8] sm:$0xff]
    %v644 = vld [vmem:[%s6 + $0x200] sm:$0xff]
    %v645 = vld [vmem:[%s6 + $0x208] sm:$0xff]
    %v646 = vld [vmem:[%s6 + $0x210] sm:$0xff]
    %v647 = vld [vmem:[%s6 + $0x218] sm:$0xff]
    %v648 = vld [vmem:[%s6 + $0x220] sm:$0xff]
    %v650 = vsel %vm454, %v605, 0
    %v653 = vsel %vm454, %v606, 0
    %v656 = vsel %vm454, %v607, 0
    %v659 = vsel %vm454, %v608, 0
    %661 = vmatpush.msra.mxu0 0.0
    %662 = vmatpush.msra.mxu0 0.0
    %663 = vmatpush.msra.mxu0 0.0
    %664 = vmatpush.msra.mxu0 0.0
    %665 = vmatpush.msra.mxu0 0.0
    %666 = vmatpush.msra.mxu0 0.0
    %667 = vmatpush.msra.mxu0 0.0
    %668 = vmatpush.msra.mxu0 0.0
    %669 = vmatpush.msra.mxu0 %v648
    %670 = vmatpush.msra.mxu0 %v647
    %671 = vmatpush.msra.mxu0 %v646
    %672 = vmatpush.msra.mxu0 %v645
    %673 = vmatpush.msra.mxu0 %v644
    %674 = vmatpush.msra.mxu0 %v643
    %675 = vmatpush.msra.mxu0 %v642
    %676 = vmatpush.msra.mxu0 %v641
    %677 = vmatmul.f32.gmra.mxu0 %v650
    %v678 = vpop.f32.mrf.mxu0
    %v679 = vadd.f32 0.0, %v678
    %680 = vmatmul.f32.gmra.mxu0 %v653
    %v681 = vpop.f32.mrf.mxu0
    %v682 = vadd.f32 0.0, %v681
    %683 = vmatmul.f32.gmra.mxu0 %v656
    %v684 = vpop.f32.mrf.mxu0
    %v685 = vadd.f32 0.0, %v684
    %686 = vmatmul.f32.gmra.mxu0 %v659
    %v687 = vpop.f32.mrf.mxu0
    %v688 = vadd.f32 0.0, %v687
    %689 = vdwg.mxu0
    %690 = vmatpush.msra.mxu0 0.0
    %691 = vmatpush.msra.mxu0 0.0
    %692 = vmatpush.msra.mxu0 0.0
    %693 = vmatpush.msra.mxu0 0.0
    %694 = vmatpush.msra.mxu0 0.0
    %695 = vmatpush.msra.mxu0 0.0
    %696 = vmatpush.msra.mxu0 0.0
    %697 = vmatpush.msra.mxu0 0.0
    %698 = vmatpush.msra.mxu0 0.0
    %699 = vmatpush.msra.mxu0 0.0
    %700 = vmatpush.msra.mxu0 0.0
    %701 = vmatpush.msra.mxu0 0.0
    %702 = vmatpush.msra.mxu0 0.0
    %703 = vmatpush.msra.mxu0 0.0
    %704 = vmatpush.msra.mxu0 0.0
    %705 = vmatpush.msra.mxu0 %v639
    %706 = vmatmul.f32.gmra.mxu0 %v374
    %v707 = vpop.f32.mrf.mxu0
    %v708 = vadd.f32 %v679, %v707
    %709 = vmatmul.f32.gmra.mxu0 %v377
    %v710 = vpop.f32.mrf.mxu0
    %v711 = vadd.f32 %v682, %v710
    %712 = vmatmul.f32.gmra.mxu0 %v380
    %v713 = vpop.f32.mrf.mxu0
    %v714 = vadd.f32 %v685, %v713
    %715 = vmatmul.f32.gmra.mxu0 %v383
    %v716 = vpop.f32.mrf.mxu0
    %v717 = vadd.f32 %v688, %v716
    %718 = vdwg.mxu0
    %v719 = vld [vmem:[%s6 + $0x228] sm:$0x1]
    %v720 = vperm.slane %v719, 0
    %v721 = vadd.f32 %v708, %v720
    %v722 = vadd.f32 %v711, %v720
    %v723 = vadd.f32 %v714, %v720
    %v724 = vadd.f32 %v717, %v720
    %v725 = vmax.f32 %v721, 0.0
    %v726 = vmax.f32 %v722, 0.0
    %v727 = vmax.f32 %v723, 0.0
    %v728 = vmax.f32 %v724, 0.0
    %729 = vxpose.xlu0.b32.start [1/16] %v725, 128
    %730 = vxpose.xlu0.b32.cont [2/16] %v726, 128
    %731 = vxpose.xlu0.b32.cont [3/16] %v727, 128
    %732 = vxpose.xlu0.b32.cont [4/16] %v728, 128
    %733 = vxpose.xlu0.b32.cont [5/16] 0.0, 128
    %734 = vxpose.xlu0.b32.cont [6/16] 0.0, 128
    %735 = vxpose.xlu0.b32.cont [7/16] 0.0, 128
    %736 = vxpose.xlu0.b32.cont [8/16] 0.0, 128
    %737 = vxpose.xlu0.b32.cont [9/16] 0.0, 128
    %738 = vxpose.xlu0.b32.cont [10/16] 0.0, 128
    %739 = vxpose.xlu0.b32.cont [11/16] 0.0, 128
    %740 = vxpose.xlu0.b32.cont [12/16] 0.0, 128
    %741 = vxpose.xlu0.b32.cont [13/16] 0.0, 128
    %742 = vxpose.xlu0.b32.cont [14/16] 0.0, 128
    %743 = vxpose.xlu0.b32.cont [15/16] 0.0, 128
    %744 = vxpose.xlu0.b32.end [16/16] 0.0, 128
    %v745 = vpop.trf.xlu0
    %v746 = vpop.trf.xlu0
    %v747 = vpop.trf.xlu0
    %v748 = vpop.trf.xlu0
    %v749 = vpop.trf.xlu0
    %v750 = vpop.trf.xlu0
    %v751 = vpop.trf.xlu0
    %v752 = vpop.trf.xlu0
    %v753 = vpop.trf.xlu0
    %v754 = vpop.trf.xlu0
    %v755 = vpop.trf.xlu0
    %v756 = vpop.trf.xlu0
    %v757 = vpop.trf.xlu0
    %v758 = vpop.trf.xlu0
    %v759 = vpop.trf.xlu0
    %v760 = vpop.trf.xlu0
    %763 = vrot.lane.b32.xlu0 %v747, 16
    %v764 = vpop.permute.xlu0 %763
    %765 = vrot.lane.b32.xlu0 %v748, 16
    %v766 = vpop.permute.xlu0 %765
    %771 = vrot.lane.b32.xlu0 %v749, 32
    %v772 = vpop.permute.xlu0 %771
    %773 = vrot.lane.b32.xlu0 %v750, 32
    %v774 = vpop.permute.xlu0 %773
    %779 = vrot.lane.b32.xlu0 %v751, 48
    %v780 = vpop.permute.xlu0 %779
    %781 = vrot.lane.b32.xlu0 %v752, 48
    %v782 = vpop.permute.xlu0 %781
    %v785 = vsel %vm107, %v745, %v764
    %v786 = vsel %vm107, %v746, %v766
    %v787 = vsel %vm418, %v785, %v772
    %v788 = vsel %vm418, %v786, %v774
    %vm789 = vcmask 392192
    %v790 = vsel %vm789, %v787, %v780
    %v791 = vsel %vm789, %v788, %v782
    %794 = vrot.lane.b32.xlu0 %v745, 112
    %v795 = vpop.permute.xlu0 %794
    %796 = vrot.lane.b32.xlu0 %v746, 112
    %v797 = vpop.permute.xlu0 %796
    %800 = vrot.lane.b32.xlu0 %v749, 16
    %v801 = vpop.permute.xlu0 %800
    %802 = vrot.lane.b32.xlu0 %v750, 16
    %v803 = vpop.permute.xlu0 %802
    %806 = vrot.lane.b32.xlu0 %v751, 32
    %v807 = vpop.permute.xlu0 %806
    %808 = vrot.lane.b32.xlu0 %v752, 32
    %v809 = vpop.permute.xlu0 %808
    %v812 = vsel %vm107, %v795, %v747
    %v813 = vsel %vm107, %v797, %v748
    %v814 = vsel %vm418, %v812, %v801
    %v815 = vsel %vm418, %v813, %v803
    %v816 = vsel %vm789, %v814, %v807
    %v817 = vsel %vm789, %v815, %v809
    %v818 = vld [vmem:[#allocation2 + $0x18] sm:$0xff]
    %v819 = vld [vmem:[#allocation2 + $0x20] sm:$0xff]
    %v820 = vld [vmem:[#allocation2 + $0x28] sm:$0xff]
    %v821 = vld [vmem:[#allocation2 + $0x30] sm:$0xff]
    %v822 = vld [vmem:[#allocation2 + $0x38] sm:$0xff]
    %v823 = vld [vmem:[#allocation2 + $0x40] sm:$0xff]
    %v824 = vld [vmem:[#allocation2 + $0x48] sm:$0xff]
    %v825 = vld [vmem:[#allocation2 + $0x50] sm:$0xff]
    %v826 = vld [vmem:[#allocation2 + $0x58] sm:$0xff]
    %v827 = vld [vmem:[#allocation2 + $0x60] sm:$0xff]
    %v828 = vld [vmem:[#allocation2 + $0x68] sm:$0xff]
    %v829 = vld [vmem:[#allocation2 + $0x70] sm:$0xff]
    %v830 = vld [vmem:[#allocation2 + $0x78] sm:$0xff]
    %v831 = vld [vmem:[#allocation2 + $0x80] sm:$0xff]
    %v832 = vld [vmem:[#allocation2 + $0x88] sm:$0xff]
    %v833 = vld [vmem:[#allocation2 + $0x90] sm:$0xff]
    %vm839 = vcmask 1046528
    %v840 = vrot.slane %v790, 1
    %v841 = vrot.slane %v791, 1
    %v842 = vsel %vm839, %v840, %v841
    %v843 = vrot.slane %v816, 1
    %v844 = vsel %vm839, %v841, %v843
    %v845 = vrot.slane %v817, 1
    %v846 = vsel %vm839, %v843, %v845
    %v847 = vrot.slane 0.0, 1
    %v848 = vsel %vm839, %v845, %v847
    %v849 = vsel %vm454, %v842, 0
    %v851 = vsel %vm454, %v844, 0
    %v853 = vsel %vm454, %v846, 0
    %v855 = vsel %vm454, %v848, 0
    %857 = vmatpush.msra.mxu0 0.0
    %858 = vmatpush.msra.mxu0 0.0
    %859 = vmatpush.msra.mxu0 0.0
    %860 = vmatpush.msra.mxu0 0.0
    %861 = vmatpush.msra.mxu0 0.0
    %862 = vmatpush.msra.mxu0 0.0
    %863 = vmatpush.msra.mxu0 0.0
    %864 = vmatpush.msra.mxu0 0.0
    %865 = vmatpush.msra.mxu0 %v833
    %866 = vmatpush.msra.mxu0 %v832
    %867 = vmatpush.msra.mxu0 %v831
    %868 = vmatpush.msra.mxu0 %v830
    %869 = vmatpush.msra.mxu0 %v829
    %870 = vmatpush.msra.mxu0 %v828
    %871 = vmatpush.msra.mxu0 %v827
    %872 = vmatpush.msra.mxu0 %v826
    %873 = vmatmul.f32.gmra.mxu0 %v849
    %v874 = vpop.f32.mrf.mxu0
    %v875 = vadd.f32 0.0, %v874
    %876 = vmatmul.f32.gmra.mxu0 %v851
    %v877 = vpop.f32.mrf.mxu0
    %v878 = vadd.f32 0.0, %v877
    %879 = vmatmul.f32.gmra.mxu0 %v853
    %v880 = vpop.f32.mrf.mxu0
    %v881 = vadd.f32 0.0, %v880
    %882 = vmatmul.f32.gmra.mxu0 %v855
    %v883 = vpop.f32.mrf.mxu0
    %v884 = vadd.f32 0.0, %v883
    %885 = vdwg.mxu0
    %v886 = vsel %vm454, %v790, 0
    %v888 = vsel %vm454, %v791, 0
    %v890 = vsel %vm454, %v816, 0
    %v892 = vsel %vm454, %v817, 0
    %894 = vmatpush.msra.mxu0 0.0
    %895 = vmatpush.msra.mxu0 0.0
    %896 = vmatpush.msra.mxu0 0.0
    %897 = vmatpush.msra.mxu0 0.0
    %898 = vmatpush.msra.mxu0 0.0
    %899 = vmatpush.msra.mxu0 0.0
    %900 = vmatpush.msra.mxu0 0.0
    %901 = vmatpush.msra.mxu0 0.0
    %902 = vmatpush.msra.mxu0 %v825
    %903 = vmatpush.msra.mxu0 %v824
    %904 = vmatpush.msra.mxu0 %v823
    %905 = vmatpush.msra.mxu0 %v822
    %906 = vmatpush.msra.mxu0 %v821
    %907 = vmatpush.msra.mxu0 %v820
    %908 = vmatpush.msra.mxu0 %v819
    %909 = vmatpush.msra.mxu0 %v818
    %910 = vmatmul.f32.gmra.mxu0 %v886
    %v911 = vpop.f32.mrf.mxu0
    %v912 = vadd.f32 %v875, %v911
    %913 = vmatmul.f32.gmra.mxu0 %v888
    %v914 = vpop.f32.mrf.mxu0
    %v915 = vadd.f32 %v878, %v914
    %916 = vmatmul.f32.gmra.mxu0 %v890
    %v917 = vpop.f32.mrf.mxu0
    %v918 = vadd.f32 %v881, %v917
    %919 = vmatmul.f32.gmra.mxu0 %v892
    %v920 = vpop.f32.mrf.mxu0
    %v921 = vadd.f32 %v884, %v920
    %922 = vdwg.mxu0
    %v923 = vld [vmem:[#allocation2 + $0x98] sm:$0xff]
    %v924 = vld [vmem:[#allocation2 + $0xa0] sm:$0xff]
    %v925 = vld [vmem:[#allocation2 + $0xa8] sm:$0xff]
    %v926 = vld [vmem:[#allocation2 + $0xb0] sm:$0xff]
    %v927 = vld [vmem:[#allocation2 + $0xb8] sm:$0xff]
    %v928 = vld [vmem:[#allocation2 + $0xc0] sm:$0xff]
    %v929 = vld [vmem:[#allocation2 + $0xc8] sm:$0xff]
    %v930 = vld [vmem:[#allocation2 + $0xd0] sm:$0xff]
    %vm931 = vcmask 1045504
    %v932 = vrot.slane %v790, 2
    %v933 = vrot.slane %v791, 2
    %v934 = vsel %vm931, %v932, %v933
    %v935 = vrot.slane %v816, 2
    %v936 = vsel %vm931, %v933, %v935
    %v937 = vrot.slane %v817, 2
    %v938 = vsel %vm931, %v935, %v937
    %v939 = vrot.slane 0.0, 2
    %v940 = vsel %vm931, %v937, %v939
    %v941 = vsel %vm454, %v934, 0
    %v943 = vsel %vm454, %v936, 0
    %v945 = vsel %vm454, %v938, 0
    %v947 = vsel %vm454, %v940, 0
    %949 = vmatpush.msra.mxu0 0.0
    %950 = vmatpush.msra.mxu0 0.0
    %951 = vmatpush.msra.mxu0 0.0
    %952 = vmatpush.msra.mxu0 0.0
    %953 = vmatpush.msra.mxu0 0.0
    %954 = vmatpush.msra.mxu0 0.0
    %955 = vmatpush.msra.mxu0 0.0
    %956 = vmatpush.msra.mxu0 0.0
    %957 = vmatpush.msra.mxu0 %v930
    %958 = vmatpush.msra.mxu0 %v929
    %959 = vmatpush.msra.mxu0 %v928
    %960 = vmatpush.msra.mxu0 %v927
    %961 = vmatpush.msra.mxu0 %v926
    %962 = vmatpush.msra.mxu0 %v925
    %963 = vmatpush.msra.mxu0 %v924
    %964 = vmatpush.msra.mxu0 %v923
    %965 = vmatmul.f32.gmra.mxu0 %v941
    %v966 = vpop.f32.mrf.mxu0
    %v967 = vadd.f32 0.0, %v966
    %968 = vmatmul.f32.gmra.mxu0 %v943
    %v969 = vpop.f32.mrf.mxu0
    %v970 = vadd.f32 0.0, %v969
    %971 = vmatmul.f32.gmra.mxu0 %v945
    %v972 = vpop.f32.mrf.mxu0
    %v973 = vadd.f32 0.0, %v972
    %974 = vmatmul.f32.gmra.mxu0 %v947
    %v975 = vpop.f32.mrf.mxu0
    %v976 = vadd.f32 0.0, %v975
    %977 = vdwg.mxu0
    %v978 = vadd.f32 %v912, %v967
    %v979 = vadd.f32 %v915, %v970
    %v980 = vadd.f32 %v918, %v973
    %v981 = vadd.f32 %v921, %v976
    %v982 = vld [vmem:[#allocation2 + $0xd8] sm:$0xff]
    %v983 = vld [vmem:[#allocation2 + $0xe0] sm:$0xff]
    %v984 = vld [vmem:[#allocation2 + $0xe8] sm:$0xff]
    %v985 = vld [vmem:[#allocation2 + $0xf0] sm:$0xff]
    %v986 = vld [vmem:[#allocation2 + $0xf8] sm:$0xff]
    %v987 = vld [vmem:[#allocation2 + $0x100] sm:$0xff]
    %v988 = vld [vmem:[#allocation2 + $0x108] sm:$0xff]
    %v989 = vld [vmem:[#allocation2 + $0x110] sm:$0xff]
    %vm990 = vcmask 1044480
    %v991 = vrot.slane %v790, 3
    %v992 = vrot.slane %v791, 3
    %v993 = vsel %vm990, %v991, %v992
    %v994 = vrot.slane %v816, 3
    %v995 = vsel %vm990, %v992, %v994
    %v996 = vrot.slane %v817, 3
    %v997 = vsel %vm990, %v994, %v996
    %v998 = vrot.slane 0.0, 3
    %v999 = vsel %vm990, %v996, %v998
    %v1000 = vsel %vm454, %v993, 0
    %v1002 = vsel %vm454, %v995, 0
    %v1004 = vsel %vm454, %v997, 0
    %v1006 = vsel %vm454, %v999, 0
    %1008 = vmatpush.msra.mxu0 0.0
    %1009 = vmatpush.msra.mxu0 0.0
    %1010 = vmatpush.msra.mxu0 0.0
    %1011 = vmatpush.msra.mxu0 0.0
    %1012 = vmatpush.msra.mxu0 0.0
    %1013 = vmatpush.msra.mxu0 0.0
    %1014 = vmatpush.msra.mxu0 0.0
    %1015 = vmatpush.msra.mxu0 0.0
    %1016 = vmatpush.msra.mxu0 %v989
    %1017 = vmatpush.msra.mxu0 %v988
    %1018 = vmatpush.msra.mxu0 %v987
    %1019 = vmatpush.msra.mxu0 %v986
    %1020 = vmatpush.msra.mxu0 %v985
    %1021 = vmatpush.msra.mxu0 %v984
    %1022 = vmatpush.msra.mxu0 %v983
    %1023 = vmatpush.msra.mxu0 %v982
    %1024 = vmatmul.f32.gmra.mxu0 %v1000
    %v1025 = vpop.f32.mrf.mxu0
    %v1026 = vadd.f32 0.0, %v1025
    %1027 = vmatmul.f32.gmra.mxu0 %v1002
    %v1028 = vpop.f32.mrf.mxu0
    %v1029 = vadd.f32 0.0, %v1028
    %1030 = vmatmul.f32.gmra.mxu0 %v1004
    %v1031 = vpop.f32.mrf.mxu0
    %v1032 = vadd.f32 0.0, %v1031
    %1033 = vmatmul.f32.gmra.mxu0 %v1006
    %v1034 = vpop.f32.mrf.mxu0
    %v1035 = vadd.f32 0.0, %v1034
    %1036 = vdwg.mxu0
    %v1037 = vadd.f32 %v978, %v1026
    %v1038 = vadd.f32 %v979, %v1029
    %v1039 = vadd.f32 %v980, %v1032
    %v1040 = vadd.f32 %v981, %v1035
    %v1041 = vld [vmem:[#allocation2 + $0x118] sm:$0xff]
    %v1042 = vld [vmem:[#allocation2 + $0x120] sm:$0xff]
    %v1043 = vld [vmem:[#allocation2 + $0x128] sm:$0xff]
    %v1044 = vld [vmem:[#allocation2 + $0x130] sm:$0xff]
    %v1045 = vld [vmem:[#allocation2 + $0x138] sm:$0xff]
    %v1046 = vld [vmem:[#allocation2 + $0x140] sm:$0xff]
    %v1047 = vld [vmem:[#allocation2 + $0x148] sm:$0xff]
    %v1048 = vld [vmem:[#allocation2 + $0x150] sm:$0xff]
    %v1049 = vrot.slane %v790, 4
    %v1050 = vrot.slane %v791, 4
    %v1051 = vsel %vm320, %v1049, %v1050
    %v1052 = vrot.slane %v816, 4
    %v1053 = vsel %vm320, %v1050, %v1052
    %v1054 = vrot.slane %v817, 4
    %v1055 = vsel %vm320, %v1052, %v1054
    %v1056 = vrot.slane 0.0, 4
    %v1057 = vsel %vm320, %v1054, %v1056
    %v1058 = vsel %vm454, %v1051, 0
    %v1060 = vsel %vm454, %v1053, 0
    %v1062 = vsel %vm454, %v1055, 0
    %v1064 = vsel %vm454, %v1057, 0
    %1066 = vmatpush.msra.mxu0 0.0
    %1067 = vmatpush.msra.mxu0 0.0
    %1068 = vmatpush.msra.mxu0 0.0
    %1069 = vmatpush.msra.mxu0 0.0
    %1070 = vmatpush.msra.mxu0 0.0
    %1071 = vmatpush.msra.mxu0 0.0
    %1072 = vmatpush.msra.mxu0 0.0
    %1073 = vmatpush.msra.mxu0 0.0
    %1074 = vmatpush.msra.mxu0 %v1048
    %1075 = vmatpush.msra.mxu0 %v1047
    %1076 = vmatpush.msra.mxu0 %v1046
    %1077 = vmatpush.msra.mxu0 %v1045
    %1078 = vmatpush.msra.mxu0 %v1044
    %1079 = vmatpush.msra.mxu0 %v1043
    %1080 = vmatpush.msra.mxu0 %v1042
    %1081 = vmatpush.msra.mxu0 %v1041
    %1082 = vmatmul.f32.gmra.mxu0 %v1058
    %v1083 = vpop.f32.mrf.mxu0
    %v1084 = vadd.f32 0.0, %v1083
    %1085 = vmatmul.f32.gmra.mxu0 %v1060
    %v1086 = vpop.f32.mrf.mxu0
    %v1087 = vadd.f32 0.0, %v1086
    %1088 = vmatmul.f32.gmra.mxu0 %v1062
    %v1089 = vpop.f32.mrf.mxu0
    %v1090 = vadd.f32 0.0, %v1089
    %1091 = vmatmul.f32.gmra.mxu0 %v1064
    %v1092 = vpop.f32.mrf.mxu0
    %v1093 = vadd.f32 0.0, %v1092
    %1094 = vdwg.mxu0
    %v1095 = vadd.f32 %v1037, %v1084
    %v1096 = vadd.f32 %v1038, %v1087
    %v1097 = vadd.f32 %v1039, %v1090
    %v1098 = vadd.f32 %v1040, %v1093
    %v1099 = vld [vmem:[#allocation2 + $0x158] sm:$0xff]
    %v1100 = vld [vmem:[#allocation2 + $0x160] sm:$0xff]
    %v1101 = vld [vmem:[#allocation2 + $0x168] sm:$0xff]
    %v1102 = vld [vmem:[#allocation2 + $0x170] sm:$0xff]
    %v1103 = vld [vmem:[#allocation2 + $0x178] sm:$0xff]
    %v1104 = vld [vmem:[#allocation2 + $0x180] sm:$0xff]
    %v1105 = vld [vmem:[#allocation2 + $0x188] sm:$0xff]
    %v1106 = vld [vmem:[#allocation2 + $0x190] sm:$0xff]
    %vm1107 = vcmask 1042432
    %v1108 = vrot.slane %v790, 5
    %v1109 = vrot.slane %v791, 5
    %v1110 = vsel %vm1107, %v1108, %v1109
    %v1111 = vrot.slane %v816, 5
    %v1112 = vsel %vm1107, %v1109, %v1111
    %v1113 = vrot.slane %v817, 5
    %v1114 = vsel %vm1107, %v1111, %v1113
    %v1115 = vrot.slane 0.0, 5
    %v1116 = vsel %vm1107, %v1113, %v1115
    %v1117 = vsel %vm454, %v1110, 0
    %v1119 = vsel %vm454, %v1112, 0
    %v1121 = vsel %vm454, %v1114, 0
    %v1123 = vsel %vm454, %v1116, 0
    %1125 = vmatpush.msra.mxu0 0.0
    %1126 = vmatpush.msra.mxu0 0.0
    %1127 = vmatpush.msra.mxu0 0.0
    %1128 = vmatpush.msra.mxu0 0.0
    %1129 = vmatpush.msra.mxu0 0.0
    %1130 = vmatpush.msra.mxu0 0.0
    %1131 = vmatpush.msra.mxu0 0.0
    %1132 = vmatpush.msra.mxu0 0.0
    %1133 = vmatpush.msra.mxu0 %v1106
    %1134 = vmatpush.msra.mxu0 %v1105
    %1135 = vmatpush.msra.mxu0 %v1104
    %1136 = vmatpush.msra.mxu0 %v1103
    %1137 = vmatpush.msra.mxu0 %v1102
    %1138 = vmatpush.msra.mxu0 %v1101
    %1139 = vmatpush.msra.mxu0 %v1100
    %1140 = vmatpush.msra.mxu0 %v1099
    %1141 = vmatmul.f32.gmra.mxu0 %v1117
    %v1142 = vpop.f32.mrf.mxu0
    %v1143 = vadd.f32 0.0, %v1142
    %1144 = vmatmul.f32.gmra.mxu0 %v1119
    %v1145 = vpop.f32.mrf.mxu0
    %v1146 = vadd.f32 0.0, %v1145
    %1147 = vmatmul.f32.gmra.mxu0 %v1121
    %v1148 = vpop.f32.mrf.mxu0
    %v1149 = vadd.f32 0.0, %v1148
    %1150 = vmatmul.f32.gmra.mxu0 %v1123
    %v1151 = vpop.f32.mrf.mxu0
    %v1152 = vadd.f32 0.0, %v1151
    %1153 = vdwg.mxu0
    %v1154 = vadd.f32 %v1095, %v1143
    %v1155 = vadd.f32 %v1096, %v1146
    %v1156 = vadd.f32 %v1097, %v1149
    %v1157 = vadd.f32 %v1098, %v1152
    %v1158 = vld [vmem:[#allocation2 + $0x318] sm:$0x1]
    %v1159 = vperm.slane %v1158, 0
    %v1160 = vadd.f32 %v1154, %v1159
    %v1161 = vadd.f32 %v1155, %v1159
    %v1162 = vadd.f32 %v1156, %v1159
    %v1163 = vadd.f32 %v1157, %v1159
    %v1164 = vmax.f32 %v1160, 0.0
    %v1165 = vmax.f32 %v1161, 0.0
    %v1166 = vmax.f32 %v1162, 0.0
    %v1167 = vmax.f32 %v1163, 0.0
    %v1168 = vld [vmem:[#allocation2 + $0x198] sm:$0xff]
    %v1169 = vld [vmem:[#allocation2 + $0x1a0] sm:$0xff]
    %v1170 = vld [vmem:[#allocation2 + $0x1a8] sm:$0xff]
    %v1171 = vld [vmem:[#allocation2 + $0x1b0] sm:$0xff]
    %v1172 = vld [vmem:[#allocation2 + $0x1b8] sm:$0xff]
    %v1173 = vld [vmem:[#allocation2 + $0x1c0] sm:$0xff]
    %v1174 = vld [vmem:[#allocation2 + $0x1c8] sm:$0xff]
    %v1175 = vld [vmem:[#allocation2 + $0x1d0] sm:$0xff]
    %v1180 = vrot.slane %v1164, 1
    %v1181 = vrot.slane %v1165, 1
    %v1182 = vsel %vm839, %v1180, %v1181
    %v1183 = vrot.slane %v1166, 1
    %v1184 = vsel %vm839, %v1181, %v1183
    %v1185 = vrot.slane %v1167, 1
    %v1186 = vsel %vm839, %v1183, %v1185
    %v1187 = vsel %vm839, %v1185, %v847
    %v1188 = vsel %vm418, %v1182, 0
    %v1190 = vsel %vm418, %v1184, 0
    %v1192 = vsel %vm418, %v1186, 0
    %v1194 = vsel %vm418, %v1187, 0
    %1196 = vmatpush.msra.mxu0 0.0
    %1197 = vmatpush.msra.mxu0 0.0
    %1198 = vmatpush.msra.mxu0 0.0
    %1199 = vmatpush.msra.mxu0 0.0
    %1200 = vmatpush.msra.mxu0 0.0
    %1201 = vmatpush.msra.mxu0 0.0
    %1202 = vmatpush.msra.mxu0 0.0
    %1203 = vmatpush.msra.mxu0 0.0
    %1204 = vmatpush.msra.mxu0 0.0
    %1205 = vmatpush.msra.mxu0 0.0
    %1206 = vmatpush.msra.mxu0 0.0
    %1207 = vmatpush.msra.mxu0 0.0
    %1208 = vmatpush.msra.mxu0 %v1175
    %1209 = vmatpush.msra.mxu0 %v1174
    %1210 = vmatpush.msra.mxu0 %v1173
    %1211 = vmatpush.msra.mxu0 %v1172
    %1212 = vmatmul.f32.gmra.mxu0 %v1188
    %v1213 = vpop.f32.mrf.mxu0
    %v1214 = vadd.f32 0.0, %v1213
    %1215 = vmatmul.f32.gmra.mxu0 %v1190
    %v1216 = vpop.f32.mrf.mxu0
    %v1217 = vadd.f32 0.0, %v1216
    %1218 = vmatmul.f32.gmra.mxu0 %v1192
    %v1219 = vpop.f32.mrf.mxu0
    %v1220 = vadd.f32 0.0, %v1219
    %1221 = vmatmul.f32.gmra.mxu0 %v1194
    %v1222 = vpop.f32.mrf.mxu0
    %v1223 = vadd.f32 0.0, %v1222
    %1224 = vdwg.mxu0
    %v1225 = vsel %vm418, %v1164, 0
    %v1227 = vsel %vm418, %v1165, 0
    %v1229 = vsel %vm418, %v1166, 0
    %v1231 = vsel %vm418, %v1167, 0
    %1233 = vmatpush.msra.mxu0 0.0
    %1234 = vmatpush.msra.mxu0 0.0
    %1235 = vmatpush.msra.mxu0 0.0
    %1236 = vmatpush.msra.mxu0 0.0
    %1237 = vmatpush.msra.mxu0 0.0
    %1238 = vmatpush.msra.mxu0 0.0
    %1239 = vmatpush.msra.mxu0 0.0
    %1240 = vmatpush.msra.mxu0 0.0
    %1241 = vmatpush.msra.mxu0 0.0
    %1242 = vmatpush.msra.mxu0 0.0
    %1243 = vmatpush.msra.mxu0 0.0
    %1244 = vmatpush.msra.mxu0 0.0
    %1245 = vmatpush.msra.mxu0 %v1171
    %1246 = vmatpush.msra.mxu0 %v1170
    %1247 = vmatpush.msra.mxu0 %v1169
    %1248 = vmatpush.msra.mxu0 %v1168
    %1249 = vmatmul.f32.gmra.mxu0 %v1225
    %v1250 = vpop.f32.mrf.mxu0
    %v1251 = vadd.f32 %v1214, %v1250
    %1252 = vmatmul.f32.gmra.mxu0 %v1227
    %v1253 = vpop.f32.mrf.mxu0
    %v1254 = vadd.f32 %v1217, %v1253
    %1255 = vmatmul.f32.gmra.mxu0 %v1229
    %v1256 = vpop.f32.mrf.mxu0
    %v1257 = vadd.f32 %v1220, %v1256
    %1258 = vmatmul.f32.gmra.mxu0 %v1231
    %v1259 = vpop.f32.mrf.mxu0
    %v1260 = vadd.f32 %v1223, %v1259
    %1261 = vdwg.mxu0
    %v1262 = vld [vmem:[#allocation2 + $0x1d8] sm:$0xff]
    %v1263 = vld [vmem:[#allocation2 + $0x1e0] sm:$0xff]
    %v1264 = vld [vmem:[#allocation2 + $0x1e8] sm:$0xff]
    %v1265 = vld [vmem:[#allocation2 + $0x1f0] sm:$0xff]
    %v1266 = vrot.slane %v1164, 2
    %v1267 = vrot.slane %v1165, 2
    %v1268 = vsel %vm931, %v1266, %v1267
    %v1269 = vrot.slane %v1166, 2
    %v1270 = vsel %vm931, %v1267, %v1269
    %v1271 = vrot.slane %v1167, 2
    %v1272 = vsel %vm931, %v1269, %v1271
    %v1273 = vsel %vm931, %v1271, %v939
    %v1274 = vsel %vm418, %v1268, 0
    %v1276 = vsel %vm418, %v1270, 0
    %v1278 = vsel %vm418, %v1272, 0
    %v1280 = vsel %vm418, %v1273, 0
    %1282 = vmatpush.msra.mxu0 0.0
    %1283 = vmatpush.msra.mxu0 0.0
    %1284 = vmatpush.msra.mxu0 0.0
    %1285 = vmatpush.msra.mxu0 0.0
    %1286 = vmatpush.msra.mxu0 0.0
    %1287 = vmatpush.msra.mxu0 0.0
    %1288 = vmatpush.msra.mxu0 0.0
    %1289 = vmatpush.msra.mxu0 0.0
    %1290 = vmatpush.msra.mxu0 0.0
    %1291 = vmatpush.msra.mxu0 0.0
    %1292 = vmatpush.msra.mxu0 0.0
    %1293 = vmatpush.msra.mxu0 0.0
    %1294 = vmatpush.msra.mxu0 %v1265
    %1295 = vmatpush.msra.mxu0 %v1264
    %1296 = vmatpush.msra.mxu0 %v1263
    %1297 = vmatpush.msra.mxu0 %v1262
    %1298 = vmatmul.f32.gmra.mxu0 %v1274
    %v1299 = vpop.f32.mrf.mxu0
    %v1300 = vadd.f32 0.0, %v1299
    %1301 = vmatmul.f32.gmra.mxu0 %v1276
    %v1302 = vpop.f32.mrf.mxu0
    %v1303 = vadd.f32 0.0, %v1302
    %1304 = vmatmul.f32.gmra.mxu0 %v1278
    %v1305 = vpop.f32.mrf.mxu0
    %v1306 = vadd.f32 0.0, %v1305
    %1307 = vmatmul.f32.gmra.mxu0 %v1280
    %v1308 = vpop.f32.mrf.mxu0
    %v1309 = vadd.f32 0.0, %v1308
    %1310 = vdwg.mxu0
    %v1311 = vadd.f32 %v1251, %v1300
    %v1312 = vadd.f32 %v1254, %v1303
    %v1313 = vadd.f32 %v1257, %v1306
    %v1314 = vadd.f32 %v1260, %v1309
    %v1315 = vld [vmem:[#allocation2 + $0x1f8] sm:$0xff]
    %v1316 = vld [vmem:[#allocation2 + $0x200] sm:$0xff]
    %v1317 = vld [vmem:[#allocation2 + $0x208] sm:$0xff]
    %v1318 = vld [vmem:[#allocation2 + $0x210] sm:$0xff]
    %v1319 = vrot.slane %v1164, 3
    %v1320 = vrot.slane %v1165, 3
    %v1321 = vsel %vm990, %v1319, %v1320
    %v1322 = vrot.slane %v1166, 3
    %v1323 = vsel %vm990, %v1320, %v1322
    %v1324 = vrot.slane %v1167, 3
    %v1325 = vsel %vm990, %v1322, %v1324
    %v1326 = vsel %vm990, %v1324, %v998
    %v1327 = vsel %vm418, %v1321, 0
    %v1329 = vsel %vm418, %v1323, 0
    %v1331 = vsel %vm418, %v1325, 0
    %v1333 = vsel %vm418, %v1326, 0
    %1335 = vmatpush.msra.mxu0 0.0
    %1336 = vmatpush.msra.mxu0 0.0
    %1337 = vmatpush.msra.mxu0 0.0
    %1338 = vmatpush.msra.mxu0 0.0
    %1339 = vmatpush.msra.mxu0 0.0
    %1340 = vmatpush.msra.mxu0 0.0
    %1341 = vmatpush.msra.mxu0 0.0
    %1342 = vmatpush.msra.mxu0 0.0
    %1343 = vmatpush.msra.mxu0 0.0
    %1344 = vmatpush.msra.mxu0 0.0
    %1345 = vmatpush.msra.mxu0 0.0
    %1346 = vmatpush.msra.mxu0 0.0
    %1347 = vmatpush.msra.mxu0 %v1318
    %1348 = vmatpush.msra.mxu0 %v1317
    %1349 = vmatpush.msra.mxu0 %v1316
    %1350 = vmatpush.msra.mxu0 %v1315
    %1351 = vmatmul.f32.gmra.mxu0 %v1327
    %v1352 = vpop.f32.mrf.mxu0
    %v1353 = vadd.f32 0.0, %v1352
    %1354 = vmatmul.f32.gmra.mxu0 %v1329
    %v1355 = vpop.f32.mrf.mxu0
    %v1356 = vadd.f32 0.0, %v1355
    %1357 = vmatmul.f32.gmra.mxu0 %v1331
    %v1358 = vpop.f32.mrf.mxu0
    %v1359 = vadd.f32 0.0, %v1358
    %1360 = vmatmul.f32.gmra.mxu0 %v1333
    %v1361 = vpop.f32.mrf.mxu0
    %v1362 = vadd.f32 0.0, %v1361
    %1363 = vdwg.mxu0
    %v1364 = vadd.f32 %v1311, %v1353
    %v1365 = vadd.f32 %v1312, %v1356
    %v1366 = vadd.f32 %v1313, %v1359
    %v1367 = vadd.f32 %v1314, %v1362
    %v1368 = vld [vmem:[#allocation2 + $0x218] sm:$0xff]
    %v1369 = vld [vmem:[#allocation2 + $0x220] sm:$0xff]
    %v1370 = vld [vmem:[#allocation2 + $0x228] sm:$0xff]
    %v1371 = vld [vmem:[#allocation2 + $0x230] sm:$0xff]
    %v1372 = vrot.slane %v1164, 4
    %v1373 = vrot.slane %v1165, 4
    %v1374 = vsel %vm320, %v1372, %v1373
    %v1375 = vrot.slane %v1166, 4
    %v1376 = vsel %vm320, %v1373, %v1375
    %v1377 = vrot.slane %v1167, 4
    %v1378 = vsel %vm320, %v1375, %v1377
    %v1379 = vsel %vm320, %v1377, %v1056
    %v1380 = vsel %vm418, %v1374, 0
    %v1382 = vsel %vm418, %v1376, 0
    %v1384 = vsel %vm418, %v1378, 0
    %v1386 = vsel %vm418, %v1379, 0
    %1388 = vmatpush.msra.mxu0 0.0
    %1389 = vmatpush.msra.mxu0 0.0
    %1390 = vmatpush.msra.mxu0 0.0
    %1391 = vmatpush.msra.mxu0 0.0
    %1392 = vmatpush.msra.mxu0 0.0
    %1393 = vmatpush.msra.mxu0 0.0
    %1394 = vmatpush.msra.mxu0 0.0
    %1395 = vmatpush.msra.mxu0 0.0
    %1396 = vmatpush.msra.mxu0 0.0
    %1397 = vmatpush.msra.mxu0 0.0
    %1398 = vmatpush.msra.mxu0 0.0
    %1399 = vmatpush.msra.mxu0 0.0
    %1400 = vmatpush.msra.mxu0 %v1371
    %1401 = vmatpush.msra.mxu0 %v1370
    %1402 = vmatpush.msra.mxu0 %v1369
    %1403 = vmatpush.msra.mxu0 %v1368
    %1404 = vmatmul.f32.gmra.mxu0 %v1380
    %v1405 = vpop.f32.mrf.mxu0
    %v1406 = vadd.f32 0.0, %v1405
    %1407 = vmatmul.f32.gmra.mxu0 %v1382
    %v1408 = vpop.f32.mrf.mxu0
    %v1409 = vadd.f32 0.0, %v1408
    %1410 = vmatmul.f32.gmra.mxu0 %v1384
    %v1411 = vpop.f32.mrf.mxu0
    %v1412 = vadd.f32 0.0, %v1411
    %1413 = vmatmul.f32.gmra.mxu0 %v1386
    %v1414 = vpop.f32.mrf.mxu0
    %v1415 = vadd.f32 0.0, %v1414
    %1416 = vdwg.mxu0
    %v1417 = vadd.f32 %v1364, %v1406
    %v1418 = vadd.f32 %v1365, %v1409
    %v1419 = vadd.f32 %v1366, %v1412
    %v1420 = vadd.f32 %v1367, %v1415
    %v1421 = vld [vmem:[#allocation2 + $0x238] sm:$0xff]
    %v1422 = vld [vmem:[#allocation2 + $0x240] sm:$0xff]
    %v1423 = vld [vmem:[#allocation2 + $0x248] sm:$0xff]
    %v1424 = vld [vmem:[#allocation2 + $0x250] sm:$0xff]
    %v1425 = vrot.slane %v1164, 5
    %v1426 = vrot.slane %v1165, 5
    %v1427 = vsel %vm1107, %v1425, %v1426
    %v1428 = vrot.slane %v1166, 5
    %v1429 = vsel %vm1107, %v1426, %v1428
    %v1430 = vrot.slane %v1167, 5
    %v1431 = vsel %vm1107, %v1428, %v1430
    %v1432 = vsel %vm1107, %v1430, %v1115
    %v1433 = vsel %vm418, %v1427, 0
    %v1435 = vsel %vm418, %v1429, 0
    %v1437 = vsel %vm418, %v1431, 0
    %v1439 = vsel %vm418, %v1432, 0
    %1441 = vmatpush.msra.mxu0 0.0
    %1442 = vmatpush.msra.mxu0 0.0
    %1443 = vmatpush.msra.mxu0 0.0
    %1444 = vmatpush.msra.mxu0 0.0
    %1445 = vmatpush.msra.mxu0 0.0
    %1446 = vmatpush.msra.mxu0 0.0
    %1447 = vmatpush.msra.mxu0 0.0
    %1448 = vmatpush.msra.mxu0 0.0
    %1449 = vmatpush.msra.mxu0 0.0
    %1450 = vmatpush.msra.mxu0 0.0
    %1451 = vmatpush.msra.mxu0 0.0
    %1452 = vmatpush.msra.mxu0 0.0
    %1453 = vmatpush.msra.mxu0 %v1424
    %1454 = vmatpush.msra.mxu0 %v1423
    %1455 = vmatpush.msra.mxu0 %v1422
    %1456 = vmatpush.msra.mxu0 %v1421
    %1457 = vmatmul.f32.gmra.mxu0 %v1433
    %v1458 = vpop.f32.mrf.mxu0
    %v1459 = vadd.f32 0.0, %v1458
    %1460 = vmatmul.f32.gmra.mxu0 %v1435
    %v1461 = vpop.f32.mrf.mxu0
    %v1462 = vadd.f32 0.0, %v1461
    %1463 = vmatmul.f32.gmra.mxu0 %v1437
    %v1464 = vpop.f32.mrf.mxu0
    %v1465 = vadd.f32 0.0, %v1464
    %1466 = vmatmul.f32.gmra.mxu0 %v1439
    %v1467 = vpop.f32.mrf.mxu0
    %v1468 = vadd.f32 0.0, %v1467
    %1469 = vdwg.mxu0
    %v1470 = vadd.f32 %v1417, %v1459
    %v1471 = vadd.f32 %v1418, %v1462
    %v1472 = vadd.f32 %v1419, %v1465
    %v1473 = vadd.f32 %v1420, %v1468
    %v1474 = vld [vmem:[#allocation2 + $0x320] sm:$0x1]
    %v1475 = vperm.slane %v1474, 0
    %v1476 = vadd.f32 %v1470, %v1475
    %v1477 = vadd.f32 %v1471, %v1475
    %v1478 = vadd.f32 %v1472, %v1475
    %v1479 = vadd.f32 %v1473, %v1475
    %v1480 = vmax.f32 %v1476, 0.0
    %v1481 = vmax.f32 %v1477, 0.0
    %v1482 = vmax.f32 %v1478, 0.0
    %v1483 = vmax.f32 %v1479, 0.0
    %v1484 = vld [vmem:[#allocation2 + $0x258] sm:$0xff]
    %v1485 = vld [vmem:[#allocation2 + $0x260] sm:$0xff]
    %v1486 = vld [vmem:[#allocation2 + $0x268] sm:$0xff]
    %v1487 = vld [vmem:[#allocation2 + $0x270] sm:$0xff]
    %v1488 = vld [vmem:[#allocation2 + $0x278] sm:$0xff]
    %v1489 = vld [vmem:[#allocation2 + $0x280] sm:$0xff]
    %v1490 = vld [vmem:[#allocation2 + $0x288] sm:$0xff]
    %v1491 = vld [vmem:[#allocation2 + $0x290] sm:$0xff]
    %v1496 = vrot.slane %v1480, 1
    %v1497 = vrot.slane %v1481, 1
    %v1498 = vsel %vm839, %v1496, %v1497
    %v1499 = vrot.slane %v1482, 1
    %v1500 = vsel %vm839, %v1497, %v1499
    %v1501 = vrot.slane %v1483, 1
    %v1502 = vsel %vm839, %v1499, %v1501
    %v1503 = vsel %vm839, %v1501, %v847
    %v1504 = vsel %vm418, %v1498, 0
    %v1506 = vsel %vm418, %v1500, 0
    %v1508 = vsel %vm418, %v1502, 0
    %v1510 = vsel %vm418, %v1503, 0
    %1512 = vmatpush.msra.mxu0 0.0
    %1513 = vmatpush.msra.mxu0 0.0
    %1514 = vmatpush.msra.mxu0 0.0
    %1515 = vmatpush.msra.mxu0 0.0
    %1516 = vmatpush.msra.mxu0 0.0
    %1517 = vmatpush.msra.mxu0 0.0
    %1518 = vmatpush.msra.mxu0 0.0
    %1519 = vmatpush.msra.mxu0 0.0
    %1520 = vmatpush.msra.mxu0 0.0
    %1521 = vmatpush.msra.mxu0 0.0
    %1522 = vmatpush.msra.mxu0 0.0
    %1523 = vmatpush.msra.mxu0 0.0
    %1524 = vmatpush.msra.mxu0 %v1491
    %1525 = vmatpush.msra.mxu0 %v1490
    %1526 = vmatpush.msra.mxu0 %v1489
    %1527 = vmatpush.msra.mxu0 %v1488
    %1528 = vmatmul.f32.gmra.mxu0 %v1504
    %v1529 = vpop.f32.mrf.mxu0
    %v1530 = vadd.f32 0.0, %v1529
    %1531 = vmatmul.f32.gmra.mxu0 %v1506
    %v1532 = vpop.f32.mrf.mxu0
    %1533 = vmatmul.f32.gmra.mxu0 %v1508
    %v1534 = vpop.f32.mrf.mxu0
    %v1535 = vadd.f32 0.0, %v1534
    %1536 = vmatmul.f32.gmra.mxu0 %v1510
    %v1537 = vpop.f32.mrf.mxu0
    %1538 = vdwg.mxu0
    %v1539 = vsel %vm418, %v1480, 0
    %v1541 = vsel %vm418, %v1481, 0
    %v1543 = vsel %vm418, %v1482, 0
    %v1545 = vsel %vm418, %v1483, 0
    %1547 = vmatpush.msra.mxu0 0.0
    %1548 = vmatpush.msra.mxu0 0.0
    %1549 = vmatpush.msra.mxu0 0.0
    %1550 = vmatpush.msra.mxu0 0.0
    %1551 = vmatpush.msra.mxu0 0.0
    %1552 = vmatpush.msra.mxu0 0.0
    %1553 = vmatpush.msra.mxu0 0.0
    %1554 = vmatpush.msra.mxu0 0.0
    %1555 = vmatpush.msra.mxu0 0.0
    %1556 = vmatpush.msra.mxu0 0.0
    %1557 = vmatpush.msra.mxu0 0.0
    %1558 = vmatpush.msra.mxu0 0.0
    %1559 = vmatpush.msra.mxu0 %v1487
    %1560 = vmatpush.msra.mxu0 %v1486
    %1561 = vmatpush.msra.mxu0 %v1485
    %1562 = vmatpush.msra.mxu0 %v1484
    %1563 = vmatmul.f32.gmra.mxu0 %v1539
    %v1564 = vpop.f32.mrf.mxu0
    %v1565 = vadd.f32 %v1530, %v1564
    %1566 = vmatmul.f32.gmra.mxu0 %v1541
    %v1567 = vpop.f32.mrf.mxu0
    %1568 = vmatmul.f32.gmra.mxu0 %v1543
    %v1569 = vpop.f32.mrf.mxu0
    %v1570 = vadd.f32 %v1535, %v1569
    %1571 = vmatmul.f32.gmra.mxu0 %v1545
    %v1572 = vpop.f32.mrf.mxu0
    %1573 = vdwg.mxu0
    %v1574 = vld [vmem:[#allocation2 + $0x298] sm:$0xff]
    %v1575 = vld [vmem:[#allocation2 + $0x2a0] sm:$0xff]
    %v1576 = vld [vmem:[#allocation2 + $0x2a8] sm:$0xff]
    %v1577 = vld [vmem:[#allocation2 + $0x2b0] sm:$0xff]
    %v1578 = vrot.slane %v1480, 2
    %v1579 = vrot.slane %v1481, 2
    %v1580 = vsel %vm931, %v1578, %v1579
    %v1581 = vrot.slane %v1482, 2
    %v1582 = vsel %vm931, %v1579, %v1581
    %v1583 = vrot.slane %v1483, 2
    %v1584 = vsel %vm931, %v1581, %v1583
    %v1585 = vsel %vm931, %v1583, %v939
    %v1586 = vsel %vm418, %v1580, 0
    %v1588 = vsel %vm418, %v1582, 0
    %v1590 = vsel %vm418, %v1584, 0
    %v1592 = vsel %vm418, %v1585, 0
    %1594 = vmatpush.msra.mxu0 0.0
    %1595 = vmatpush.msra.mxu0 0.0
    %1596 = vmatpush.msra.mxu0 0.0
    %1597 = vmatpush.msra.mxu0 0.0
    %1598 = vmatpush.msra.mxu0 0.0
    %1599 = vmatpush.msra.mxu0 0.0
    %1600 = vmatpush.msra.mxu0 0.0
    %1601 = vmatpush.msra.mxu0 0.0
    %1602 = vmatpush.msra.mxu0 0.0
    %1603 = vmatpush.msra.mxu0 0.0
    %1604 = vmatpush.msra.mxu0 0.0
    %1605 = vmatpush.msra.mxu0 0.0
    %1606 = vmatpush.msra.mxu0 %v1577
    %1607 = vmatpush.msra.mxu0 %v1576
    %1608 = vmatpush.msra.mxu0 %v1575
    %1609 = vmatpush.msra.mxu0 %v1574
    %1610 = vmatmul.f32.gmra.mxu0 %v1586
    %v1611 = vpop.f32.mrf.mxu0
    %v1612 = vadd.f32 0.0, %v1611
    %1613 = vmatmul.f32.gmra.mxu0 %v1588
    %v1614 = vpop.f32.mrf.mxu0
    %1615 = vmatmul.f32.gmra.mxu0 %v1590
    %v1616 = vpop.f32.mrf.mxu0
    %v1617 = vadd.f32 0.0, %v1616
    %1618 = vmatmul.f32.gmra.mxu0 %v1592
    %v1619 = vpop.f32.mrf.mxu0
    %1620 = vdwg.mxu0
    %v1621 = vadd.f32 %v1565, %v1612
    %v1622 = vadd.f32 %v1570, %v1617
    %v1623 = vld [vmem:[#allocation2 + $0x2b8] sm:$0xff]
    %v1624 = vld [vmem:[#allocation2 + $0x2c0] sm:$0xff]
    %v1625 = vld [vmem:[#allocation2 + $0x2c8] sm:$0xff]
    %v1626 = vld [vmem:[#allocation2 + $0x2d0] sm:$0xff]
    %v1627 = vrot.slane %v1480, 3
    %v1628 = vrot.slane %v1481, 3
    %v1629 = vsel %vm990, %v1627, %v1628
    %v1630 = vrot.slane %v1482, 3
    %v1631 = vsel %vm990, %v1628, %v1630
    %v1632 = vrot.slane %v1483, 3
    %v1633 = vsel %vm990, %v1630, %v1632
    %v1634 = vsel %vm990, %v1632, %v998
    %v1635 = vsel %vm418, %v1629, 0
    %v1637 = vsel %vm418, %v1631, 0
    %v1639 = vsel %vm418, %v1633, 0
    %v1641 = vsel %vm418, %v1634, 0
    %1643 = vmatpush.msra.mxu0 0.0
    %1644 = vmatpush.msra.mxu0 0.0
    %1645 = vmatpush.msra.mxu0 0.0
    %1646 = vmatpush.msra.mxu0 0.0
    %1647 = vmatpush.msra.mxu0 0.0
    %1648 = vmatpush.msra.mxu0 0.0
    %1649 = vmatpush.msra.mxu0 0.0
    %1650 = vmatpush.msra.mxu0 0.0
    %1651 = vmatpush.msra.mxu0 0.0
    %1652 = vmatpush.msra.mxu0 0.0
    %1653 = vmatpush.msra.mxu0 0.0
    %1654 = vmatpush.msra.mxu0 0.0
    %1655 = vmatpush.msra.mxu0 %v1626
    %1656 = vmatpush.msra.mxu0 %v1625
    %1657 = vmatpush.msra.mxu0 %v1624
    %1658 = vmatpush.msra.mxu0 %v1623
    %1659 = vmatmul.f32.gmra.mxu0 %v1635
    %v1660 = vpop.f32.mrf.mxu0
    %v1661 = vadd.f32 0.0, %v1660
    %1662 = vmatmul.f32.gmra.mxu0 %v1637
    %v1663 = vpop.f32.mrf.mxu0
    %1664 = vmatmul.f32.gmra.mxu0 %v1639
    %v1665 = vpop.f32.mrf.mxu0
    %v1666 = vadd.f32 0.0, %v1665
    %1667 = vmatmul.f32.gmra.mxu0 %v1641
    %v1668 = vpop.f32.mrf.mxu0
    %1669 = vdwg.mxu0
    %v1670 = vadd.f32 %v1621, %v1661
    %v1671 = vadd.f32 %v1622, %v1666
    %v1672 = vld [vmem:[#allocation2 + $0x2d8] sm:$0xff]
    %v1673 = vld [vmem:[#allocation2 + $0x2e0] sm:$0xff]
    %v1674 = vld [vmem:[#allocation2 + $0x2e8] sm:$0xff]
    %v1675 = vld [vmem:[#allocation2 + $0x2f0] sm:$0xff]
    %v1676 = vrot.slane %v1480, 4
    %v1677 = vrot.slane %v1481, 4
    %v1678 = vsel %vm320, %v1676, %v1677
    %v1679 = vrot.slane %v1482, 4
    %v1680 = vsel %vm320, %v1677, %v1679
    %v1681 = vrot.slane %v1483, 4
    %v1682 = vsel %vm320, %v1679, %v1681
    %v1683 = vsel %vm320, %v1681, %v1056
    %v1684 = vsel %vm418, %v1678, 0
    %v1686 = vsel %vm418, %v1680, 0
    %v1688 = vsel %vm418, %v1682, 0
    %v1690 = vsel %vm418, %v1683, 0
    %1692 = vmatpush.msra.mxu0 0.0
    %1693 = vmatpush.msra.mxu0 0.0
    %1694 = vmatpush.msra.mxu0 0.0
    %1695 = vmatpush.msra.mxu0 0.0
    %1696 = vmatpush.msra.mxu0 0.0
    %1697 = vmatpush.msra.mxu0 0.0
    %1698 = vmatpush.msra.mxu0 0.0
    %1699 = vmatpush.msra.mxu0 0.0
    %1700 = vmatpush.msra.mxu0 0.0
    %1701 = vmatpush.msra.mxu0 0.0
    %1702 = vmatpush.msra.mxu0 0.0
    %1703 = vmatpush.msra.mxu0 0.0
    %1704 = vmatpush.msra.mxu0 %v1675
    %1705 = vmatpush.msra.mxu0 %v1674
    %1706 = vmatpush.msra.mxu0 %v1673
    %1707 = vmatpush.msra.mxu0 %v1672
    %1708 = vmatmul.f32.gmra.mxu0 %v1684
    %v1709 = vpop.f32.mrf.mxu0
    %v1710 = vadd.f32 0.0, %v1709
    %1711 = vmatmul.f32.gmra.mxu0 %v1686
    %v1712 = vpop.f32.mrf.mxu0
    %1713 = vmatmul.f32.gmra.mxu0 %v1688
    %v1714 = vpop.f32.mrf.mxu0
    %v1715 = vadd.f32 0.0, %v1714
    %1716 = vmatmul.f32.gmra.mxu0 %v1690
    %v1717 = vpop.f32.mrf.mxu0
    %1718 = vdwg.mxu0
    %v1719 = vadd.f32 %v1670, %v1710
    %v1720 = vadd.f32 %v1671, %v1715
    %v1721 = vld [vmem:[#allocation2 + $0x2f8] sm:$0xff]
    %v1722 = vld [vmem:[#allocation2 + $0x300] sm:$0xff]
    %v1723 = vld [vmem:[#allocation2 + $0x308] sm:$0xff]
    %v1724 = vld [vmem:[#allocation2 + $0x310] sm:$0xff]
    %v1725 = vrot.slane %v1480, 5
    %v1726 = vrot.slane %v1481, 5
    %v1727 = vsel %vm1107, %v1725, %v1726
    %v1728 = vrot.slane %v1482, 5
    %v1729 = vsel %vm1107, %v1726, %v1728
    %v1730 = vrot.slane %v1483, 5
    %v1731 = vsel %vm1107, %v1728, %v1730
    %v1732 = vsel %vm1107, %v1730, %v1115
    %v1733 = vsel %vm418, %v1727, 0
    %v1735 = vsel %vm418, %v1729, 0
    %v1737 = vsel %vm418, %v1731, 0
    %v1739 = vsel %vm418, %v1732, 0
    %1741 = vmatpush.msra.mxu0 0.0
    %1742 = vmatpush.msra.mxu0 0.0
    %1743 = vmatpush.msra.mxu0 0.0
    %1744 = vmatpush.msra.mxu0 0.0
    %1745 = vmatpush.msra.mxu0 0.0
    %1746 = vmatpush.msra.mxu0 0.0
    %1747 = vmatpush.msra.mxu0 0.0
    %1748 = vmatpush.msra.mxu0 0.0
    %1749 = vmatpush.msra.mxu0 0.0
    %1750 = vmatpush.msra.mxu0 0.0
    %1751 = vmatpush.msra.mxu0 0.0
    %1752 = vmatpush.msra.mxu0 0.0
    %1753 = vmatpush.msra.mxu0 %v1724
    %1754 = vmatpush.msra.mxu0 %v1723
    %1755 = vmatpush.msra.mxu0 %v1722
    %1756 = vmatpush.msra.mxu0 %v1721
    %1757 = vmatmul.f32.gmra.mxu0 %v1733
    %v1758 = vpop.f32.mrf.mxu0
    %v1759 = vadd.f32 0.0, %v1758
    %1760 = vmatmul.f32.gmra.mxu0 %v1735
    %v1761 = vpop.f32.mrf.mxu0
    %1762 = vmatmul.f32.gmra.mxu0 %v1737
    %v1763 = vpop.f32.mrf.mxu0
    %v1764 = vadd.f32 0.0, %v1763
    %1765 = vmatmul.f32.gmra.mxu0 %v1739
    %v1766 = vpop.f32.mrf.mxu0
    %1767 = vdwg.mxu0
    %v1768 = vadd.f32 %v1719, %v1759
    %v1769 = vadd.f32 %v1720, %v1764
    %v1770 = vld [vmem:[#allocation2 + $0x328] sm:$0x1]
    %v1771 = vperm.slane %v1770, 0
    %v1772 = vadd.f32 %v1768, %v1771
    %v1773 = vadd.f32 %v1769, %v1771
    %v1774 = vmax.f32 %v1772, 0.0
    %v1775 = vmax.f32 %v1773, 0.0
    %v1777 = vrot.slane %v1775, 7
    %vm1779 = vcmask 1040384
    %v1780 = vsel %vm1779, %v1774, %v1777
    %v1781 = vld [vmem:[#allocation2 + $0x330] sm:$0xff]
    %v1782 = vld [vmem:[#allocation2 + $0x338] sm:$0xff]
    %v1783 = vld [vmem:[#allocation2 + $0x340] sm:$0xff]
    %v1784 = vld [vmem:[#allocation2 + $0x348] sm:$0xff]
    %v1785 = vld [vmem:[#allocation2 + $0x350] sm:$0x1]
    %v1786 = vperm.slane %v1785, 0
    %v1788 = vsel %vm418, %v1780, 0
    %1790 = vmatpush.msra.mxu0 0.0
    %1791 = vmatpush.msra.mxu0 0.0
    %1792 = vmatpush.msra.mxu0 0.0
    %1793 = vmatpush.msra.mxu0 0.0
    %1794 = vmatpush.msra.mxu0 0.0
    %1795 = vmatpush.msra.mxu0 0.0
    %1796 = vmatpush.msra.mxu0 0.0
    %1797 = vmatpush.msra.mxu0 0.0
    %1798 = vmatpush.msra.mxu0 0.0
    %1799 = vmatpush.msra.mxu0 0.0
    %1800 = vmatpush.msra.mxu0 0.0
    %1801 = vmatpush.msra.mxu0 0.0
    %1802 = vmatpush.msra.mxu0 %v1784
    %1803 = vmatpush.msra.mxu0 %v1783
    %1804 = vmatpush.msra.mxu0 %v1782
    %1805 = vmatpush.msra.mxu0 %v1781
    %1806 = vmatmul.f32.gmra.mxu0 %v1788
    %v1807 = vpop.f32.mrf.mxu0
    %v1808 = vadd.f32 %v1786, %v1807
    %1809 = vdwg.mxu0
    %v1810 = vmax.f32 %v1808, 0.0
    %v1811 = vld [vmem:[#allocation2 + $0x358] sm:$0xff]
    %v1812 = vld [vmem:[#allocation2 + $0x360] sm:$0xff]
    %v1813 = vld [vmem:[#allocation2 + $0x368] sm:$0xff]
    %v1814 = vld [vmem:[#allocation2 + $0x370] sm:$0xff]
    %v1815 = vld [vmem:[#allocation2 + $0x378] sm:$0xff]
    %v1816 = vld [vmem:[#allocation2 + $0x380] sm:$0xff]
    %v1817 = vld [vmem:[#allocation2 + $0x388] sm:$0xff]
    %v1818 = vld [vmem:[#allocation2 + $0x390] sm:$0xff]
    %v1819 = vld [vmem:[#allocation2 + $0x398] sm:$0xff]
    %v1820 = vld [vmem:[#allocation2 + $0x3a0] sm:$0xff]
    %v1821 = vld [vmem:[#allocation2 + $0x3a8] sm:$0xff]
    %v1822 = vld [vmem:[#allocation2 + $0x3b0] sm:$0xff]
    %v1823 = vld [vmem:[#allocation2 + $0x3b8] sm:$0xf]
    %v1824 = vld [vmem:[%s2] sm:$0x3]
    %v1825 = vld [vmem:[#allocation2 + $0x3c0] sm:$0x1f]
    %vm1826 = vcmask 39936
    %v1828 = vsel %vm1826, %v1824, 0
    %v1831 = vsel %vm990, %v1825, 0
    %1833 = vmatpush.msra.mxu0 0.0
    %1834 = vmatpush.msra.mxu0 0.0
    %1835 = vmatpush.msra.mxu0 0.0
    %1836 = vmatpush.msra.mxu0 0.0
    %1837 = vmatpush.msra.mxu0 0.0
    %1838 = vmatpush.msra.mxu0 0.0
    %1839 = vmatpush.msra.mxu0 0.0
    %1840 = vmatpush.msra.mxu0 0.0
    %1841 = vmatpush.msra.mxu0 0.0
    %1842 = vmatpush.msra.mxu0 0.0
    %1843 = vmatpush.msra.mxu0 0.0
    %1844 = vmatpush.msra.mxu0 0.0
    %1845 = vmatpush.msra.mxu0 0.0
    %1846 = vmatpush.msra.mxu0 0.0
    %1847 = vmatpush.msra.mxu0 0.0
    %1848 = vmatpush.msra.mxu0 %v1831
    %1849 = vmatmul.f32.gmra.mxu0 %v1828
    %v1850 = vpop.f32.mrf.mxu0
    %v1851 = vadd.f32 0.0, %v1850
    %1852 = vdwg.mxu0
    %vm1853 = vcmask 818176
    %v1855 = vsel %vm1853, %v1810, 0
    %v1858 = vsel %vm320, %v1823, 0
    %1860 = vmatpush.msra.mxu0 0.0
    %1861 = vmatpush.msra.mxu0 0.0
    %1862 = vmatpush.msra.mxu0 0.0
    %1863 = vmatpush.msra.mxu0 %v1858
    %1864 = vmatpush.msra.mxu0 %v1822
    %1865 = vmatpush.msra.mxu0 %v1821
    %1866 = vmatpush.msra.mxu0 %v1820
    %1867 = vmatpush.msra.mxu0 %v1819
    %1868 = vmatpush.msra.mxu0 %v1818
    %1869 = vmatpush.msra.mxu0 %v1817
    %1870 = vmatpush.msra.mxu0 %v1816
    %1871 = vmatpush.msra.mxu0 %v1815
    %1872 = vmatpush.msra.mxu0 %v1814
    %1873 = vmatpush.msra.mxu0 %v1813
    %1874 = vmatpush.msra.mxu0 %v1812
    %1875 = vmatpush.msra.mxu0 %v1811
    %1876 = vmatmul.f32.gmra.mxu0 %v1855
    %v1877 = vpop.f32.mrf.mxu0
    %v1878 = vadd.f32 %v1851, %v1877
    %1879 = vdwg.mxu0
    %v1880 = vld [vmem:[#allocation2 + $0x3c8] sm:$0x1]
    %v1881 = vperm.slane %v1880, 0
    %v1882 = vadd.f32 %v1878, %v1881
    %v1883 = vmax.f32 %v1882, 0.0
    %v1884 = vld [vmem:[#allocation2 + $0x3d0] sm:$0xff]
    %v1885 = vld [vmem:[#allocation2 + $0x3d8] sm:$0xff]
    %v1886 = vld [vmem:[#allocation2 + $0x3e0] sm:$0xff]
    %v1887 = vld [vmem:[#allocation2 + $0x3e8] sm:$0xff]
    %v1888 = vld [vmem:[#allocation2 + $0x3f0] sm:$0xff]
    %v1889 = vld [vmem:[#allocation2 + $0x3f8] sm:$0xff]
    %v1890 = vld [vmem:[#allocation2 + $0x400] sm:$0xff]
    %v1891 = vld [vmem:[#allocation2 + $0x408] sm:$0xff]
    %v1892 = vld [vmem:[#allocation2 + $0x410] sm:$0xff]
    %v1893 = vld [vmem:[#allocation2 + $0x418] sm:$0xff]
    %v1894 = vld [vmem:[#allocation2 + $0x420] sm:$0xff]
    %v1895 = vld [vmem:[#allocation2 + $0x428] sm:$0xff]
    %v1896 = vld [vmem:[#allocation2 + $0x430] sm:$0xff]
    %v1897 = vld [vmem:[#allocation2 + $0x438] sm:$0x1]
    %v1898 = vld [vmem:[#allocation2 + $0x440] sm:$0x1]
    %v1899 = vperm.slane %v1898, 0
    %vm1900 = vcmask 859136
    %v1902 = vsel %vm1900, %v1883, 0
    %v1905 = vsel %vm1779, %v1897, 0
    %1907 = vmatpush.msra.mxu0 0.0
    %1908 = vmatpush.msra.mxu0 0.0
    %1909 = vmatpush.msra.mxu0 %v1905
    %1910 = vmatpush.msra.mxu0 %v1896
    %1911 = vmatpush.msra.mxu0 %v1895
    %1912 = vmatpush.msra.mxu0 %v1894
    %1913 = vmatpush.msra.mxu0 %v1893
    %1914 = vmatpush.msra.mxu0 %v1892
    %1915 = vmatpush.msra.mxu0 %v1891
    %1916 = vmatpush.msra.mxu0 %v1890
    %1917 = vmatpush.msra.mxu0 %v1889
    %1918 = vmatpush.msra.mxu0 %v1888
    %1919 = vmatpush.msra.mxu0 %v1887
    %1920 = vmatpush.msra.mxu0 %v1886
    %1921 = vmatpush.msra.mxu0 %v1885
    %1922 = vmatpush.msra.mxu0 %v1884
    %1923 = vmatmul.f32.gmra.mxu0 %v1902
    %v1924 = vpop.f32.mrf.mxu0
    %v1925 = vadd.f32 %v1899, %v1924
    %1926 = vdwg.mxu0
    %vm1927 = vcmask 17408
    %v1928 = vsel %vm1927, %v1925, -inf
    %1929 = vmax.xlane.f32.xlu0 %v1928
    %v1930 = vpop.xlane.xlu0 %1929
    %v1931 = vsub.f32 %v1925, %v1930
    %v1932 = vmul.f32 %v1931, 1.442695
    %v1933 = vpow.pop %v1932
    %v1934 = vsel %vm1927, %v1933, 0.0
    %1935 = vadd.xlane.f32.xlu0 %v1934
    %v1936 = vpop.xlane.xlu0 %1935
    %v1937 = vrcp.pop %v1936
    %v1938 = vmul.f32 %v1936, %v1937
    %v1939 = vsub.f32 2.0, %v1938
    %v1940 = vmul.f32 %v1937, %v1939
    %v1941 = vmul.f32 %v1933, %v1940
    %1942 = vst.msk [vmem:[#allocation5] sm:$0x3] %vm1927, %v1941
    // Predicated region
    $region38: #{forward.1} parent=1 // pred_check
      _
    $region39: #{forward.1} parent=1 // pred_check_branch
      %1944 = sbr.rel (0) target = $region41
    $region40: #{forward.1} parent=1 // pred_region
      %1946 = vsyncadd [#allocation4], 0
      %s1948 = sshll.u32 [#allocation5], 4
      %s1949 = int_to_ptr.vmem [resolvable:$true] %s1948
      %s1950 = sshll.u32 %s8, 4
      %s1951 = int_to_ptr.hbm [resolvable:$true] %s1950
      %1953 = dma.vmem_to_hbm [thread:$0]  %s1949, 32, %s1951, [#allocation4]
    $region41: #{forward.1} parent=1 // pred_fallthru
      _
    // Predicated region
    $region42: #{forward.1} parent=1 // pred_check
      _
    $region43: #{forward.1} parent=1 // pred_check_branch
      %1955 = sbr.rel (0) target = $region45
    $region44: #{forward.1} parent=1 // pred_region
      %1957 = dma.done [#allocation4], 32
    $region45: #{forward.1} parent=1 // pred_fallthru
      _
    %1958 = vsyncpa [#allocation3], 1
    %1959 = vsyncpa [#allocation4], 1

</llo_original>
